<compile_context>
chip_gen: v6e
topology: v6e:2x2x1
jax: 0.10.0
libtpu: 0.0.40
codegen_flags: <defaults>
</compile_context>

<pallas_src>
import functools

import jax
import jax.numpy as jnp
from jax.experimental import pallas as pl
from jax.experimental.pallas import tpu as pltpu

NUM_SEGMENTS = 8
DIM_MLP = 2048
CLASS_NUM = 16
TEMPERATURE = 2.0

# All three class_num-wide heads (classifier, classifier_kd, classifier_t)
# packed into ONE lane-dense 128-lane group:
#   lanes [0,C)  : classifier     (q features)
#   lanes [C,2C) : classifier_kd  (q features)
#   lanes [2C,3C): classifier_t   (t features)
HEAD_WIDTH = 128
assert 3 * CLASS_NUM <= HEAD_WIDTH


def _pick_tile(total, candidates):
    """Largest candidate that divides `total`; fall back to the full extent."""
    for c in candidates:
        if c <= total and total % c == 0:
            return c
    return total


# --------------------------------------------------------------------------
# Kernel A: fused (q|t) encoder matmul + segment-mean pooling + packed
# classifier heads.  Emits per-column-tile partial logits only.
# --------------------------------------------------------------------------
def _enc_pool_heads_kernel(x_ref, w_ref, b_ref, wh_ref, out_ref, acc_ref, *,
                           num_segments):
    k = pl.program_id(2)

    @pl.when(k == 0)
    def _init():
        acc_ref[...] = jnp.zeros_like(acc_ref)

    # K-tiled encoder matmul: bf16 inputs, f32 accumulation in VMEM scratch.
    acc_ref[...] += jnp.dot(x_ref[...], w_ref[...],
                            preferred_element_type=jnp.float32)

    @pl.when(k == pl.num_programs(2) - 1)
    def _finalize():
        tm, tn = acc_ref.shape
        nb = tm // num_segments
        feat = acc_ref[...] + b_ref[...]                         # encoder bias (f32)
        # Segment-mean pooling: (nb*S, tn) -> (nb, tn).  Layout no-op reshape:
        # splits the sublane dim at the native 8-row tile boundary (S == 8).
        pooled = jnp.mean(feat.reshape(nb, num_segments, tn), axis=1)
        # Partial logits for this feature-column tile against the packed,
        # lane-dense (tn, 128) bf16 head weight slab (bf16 MXU, f32 result).
        partial = jnp.dot(pooled.astype(wh_ref.dtype), wh_ref[...],
                          preferred_element_type=jnp.float32)
        out_ref[...] = partial[None].astype(out_ref.dtype)


def encoder_pool_heads(x_flat, w_enc, b_enc, w_heads, *, num_segments):
    bs, din = x_flat.shape
    dout = w_enc.shape[1]           # 2 * DIM_MLP  (q branch | t branch)
    hw = w_heads.shape[1]           # 128 packed head width
    assert bs % num_segments == 0
    n_batch = bs // num_segments

    # Largest-first tiles: bigger tk halves k-step / accumulator-RMW overhead,
    # bigger tn halves the number of x re-reads from HBM.
    tk = _pick_tile(din, (512, 256, 128))            # contraction tile
    tn = _pick_tile(dout, (512, 256, 128))           # output-feature tile
    tm = _pick_tile(bs, (1024, 512, 256, 128))       # row tile (multiple of 8*S)
    assert tm % num_segments == 0
    if tm != bs:
        assert (tm // num_segments) % 8 == 0
    # (8,128) layout guards for non-fallback tiles.
    assert tk == din or tk % 128 == 0
    assert tn == dout or tn % 128 == 0

    n_i, n_j, n_k = bs // tm, dout // tn, din // tk

    # VMEM budget: double-buffered pipeline inputs/outputs (bf16 except biases
    # and the partial-logit output) + single f32 accumulator.
    need = (2 * (tm * tk * 2 + tk * tn * 2 + tn * 4
                 + tn * hw * 2 + (tm // num_segments) * hw * 4)
            + tm * tn * 4)
    # Guard the _pick_tile fallback path: a full-extent tile for a production
    # din (e.g. 150528) must not silently blow VMEM (v7x has 64 MiB physical).
    assert need <= (28 << 20), (
        f"tile config tm={tm}, tk={tk}, tn={tn} needs ~{need >> 20} MiB VMEM; "
        "choose smaller tiles for this input size")
    vmem_limit = int(min(max(2 * need, 16 << 20), 32 << 20))

    return pl.pallas_call(
        functools.partial(_enc_pool_heads_kernel, num_segments=num_segments),
        out_shape=jax.ShapeDtypeStruct((n_j, n_batch, hw), jnp.float32),
        grid_spec=pltpu.PrefetchScalarGridSpec(
            num_scalar_prefetch=0,
            grid=(n_i, n_j, n_k),
            in_specs=[
                pl.BlockSpec((tm, tk), lambda i, j, k: (i, k)),   # x (bf16)
                pl.BlockSpec((tk, tn), lambda i, j, k: (k, j)),   # stacked enc weight (bf16)
                pl.BlockSpec((1, tn), lambda i, j, k: (0, j)),    # stacked enc bias (f32)
                pl.BlockSpec((tn, hw), lambda i, j, k: (j, 0)),   # packed head weight (bf16)
            ],
            out_specs=pl.BlockSpec((1, tm // num_segments, hw),
                                   lambda i, j, k: (j, i, 0)),
            scratch_shapes=[pltpu.VMEM((tm, tn), jnp.float32)],
        ),
        compiler_params=pltpu.CompilerParams(
            dimension_semantics=("parallel", "parallel", "arbitrary"),
            vmem_limit_bytes=vmem_limit,
        ),
    )(x_flat, w_enc, b_enc, w_heads)


# --------------------------------------------------------------------------
# Kernel B: sum partial logits + head bias, KD loss (KL with temperature).
# All softmax / KL math stays in f32.
# --------------------------------------------------------------------------
def _finalize_kd_kernel(part_ref, bh_ref, logits_ref, loss_ref, *,
                        class_num, inv_t, t_sq_over_n):
    i = pl.program_id(0)

    @pl.when(i == 0)
    def _init():
        loss_ref[...] = jnp.zeros_like(loss_ref)

    # Sum over the feature-column-tile axis and add the packed head bias.
    logits = jnp.sum(part_ref[...], axis=0) + bh_ref[...]        # (tb, 128) f32
    logits_ref[...] = logits.astype(logits_ref.dtype)

    # KD loss between student-kd head (lanes [C,2C)) and teacher head
    # (lanes [2C,3C)).  Slices are exactly class_num wide, so no lane padding
    # participates in the softmaxes.
    c = class_num
    kd = logits[:, c:2 * c]
    tch = logits[:, 2 * c:3 * c]

    zs = kd * inv_t                               # 1/T folded to a multiply
    zt = tch * inv_t
    zs = zs - jnp.max(zs, axis=1, keepdims=True)
    zt = zt - jnp.max(zt, axis=1, keepdims=True)
    logp_s = zs - jnp.log(jnp.sum(jnp.exp(zs), axis=1, keepdims=True))
    logp_t = zt - jnp.log(jnp.sum(jnp.exp(zt), axis=1, keepdims=True))
    p_t = jnp.exp(logp_t)

    # F.kl_div(log_p_s, p_t, size_average=False) * T^2 / N  (T^2/N prefolded).
    kl_part = jnp.sum(p_t * (logp_t - logp_s)) * t_sq_over_n
    loss_ref[...] += jnp.full((1, 1), kl_part, dtype=loss_ref.dtype)


def heads_finalize_and_kd(partial_logits, b_heads, *, class_num, temperature):
    n_j, n, hw = partial_logits.shape
    tb = _pick_tile(n, (256, 128, 64, 32, 16, 8))
    inv_t = 1.0 / temperature
    t_sq_over_n = (temperature * temperature) / n

    kernel = functools.partial(_finalize_kd_kernel, class_num=class_num,
                               inv_t=inv_t, t_sq_over_n=t_sq_over_n)
    return pl.pallas_call(
        kernel,
        out_shape=(
            jax.ShapeDtypeStruct((n, hw), jnp.float32),   # packed logits (lane-dense)
            jax.ShapeDtypeStruct((1, 1), jnp.float32),    # kd loss
        ),
        grid_spec=pltpu.PrefetchScalarGridSpec(
            num_scalar_prefetch=0,
            grid=(n // tb,),
            in_specs=[
                pl.BlockSpec((n_j, tb, hw), lambda i: (0, i, 0)),
                pl.BlockSpec((1, hw), lambda i: (0, 0)),
            ],
            out_specs=(
                pl.BlockSpec((tb, hw), lambda i: (i, 0)),
                pl.BlockSpec((1, 1), lambda i: (0, 0)),
            ),
        ),
        compiler_params=pltpu.CompilerParams(
            # Loss accumulator is resident across the grid -> MUST stay sequential.
            dimension_semantics=("arbitrary",),
        ),
    )(partial_logits, b_heads)


# --------------------------------------------------------------------------
# SDL forward (training-mode semantics: returns (pred, pred_kd, loss_kd))
# --------------------------------------------------------------------------
def sdl_forward(img, packed):
    h, w = img.shape[-2:]
    x = img.reshape((-1, 3, h, w))             # (B*S, 3, H, W) NCHW
    x_flat = x.reshape((x.shape[0], -1))       # (B*S, 3*H*W)
    # bf16 matmul inputs (MXU-native everywhere); accumulation stays f32.
    x_bf16 = x_flat.astype(jnp.bfloat16)

    partial_logits = encoder_pool_heads(
        x_bf16, packed["w_enc"], packed["b_enc"], packed["w_heads"],
        num_segments=NUM_SEGMENTS)

    logits, loss = heads_finalize_and_kd(
        partial_logits, packed["b_heads"],
        class_num=CLASS_NUM, temperature=TEMPERATURE)

    pred = logits[:, :CLASS_NUM]
    pred_kd = logits[:, CLASS_NUM:2 * CLASS_NUM]
    return pred, pred_kd, loss[0, 0]


# --------------------------------------------------------------------------
# Parameters: per-module weights (mirroring the PyTorch layout) + one-time
# packing into the fused kernel layout (done once, outside the jit'd forward).
# --------------------------------------------------------------------------
def make_params(key, din):
    ks = jax.random.split(key, 10)
    s = 0.02
    return {
        "w_enc_q": s * jax.random.normal(ks[0], (din, DIM_MLP), jnp.float32),
        "b_enc_q": s * jax.random.normal(ks[1], (1, DIM_MLP), jnp.float32),
        "w_enc_t": s * jax.random.normal(ks[2], (din, DIM_MLP), jnp.float32),
        "b_enc_t": s * jax.random.normal(ks[3], (1, DIM_MLP), jnp.float32),
        "w_cls": s * jax.random.normal(ks[4], (DIM_MLP, CLASS_NUM), jnp.float32),
        "b_cls": s * jax.random.normal(ks[5], (1, CLASS_NUM), jnp.float32),
        "w_kd": s * jax.random.normal(ks[6], (DIM_MLP, CLASS_NUM), jnp.float32),
        "b_kd": s * jax.random.normal(ks[7], (1, CLASS_NUM), jnp.float32),
        "w_cls_t": s * jax.random.normal(ks[8], (DIM_MLP, CLASS_NUM), jnp.float32),
        "b_cls_t": s * jax.random.normal(ks[9], (1, CLASS_NUM), jnp.float32),
    }


def pack_params(p):
    d, c = DIM_MLP, CLASS_NUM
    # q/t encoders fused along the output dim -> single input read per K tile.
    # Matmul weights stored in bf16 (halves the dominant HBM stream); biases f32.
    w_enc = jnp.concatenate([p["w_enc_q"], p["w_enc_t"]],
                            axis=1).astype(jnp.bfloat16)          # (din, 2D)
    b_enc = jnp.concatenate([p["b_enc_q"], p["b_enc_t"]], axis=1)  # (1, 2D) f32
    # Three c-wide heads packed into ONE lane-dense (2D, 128) slab:
    #   lanes [0,c): classifier (q), [c,2c): classifier_kd (q),
    #   [2c,3c): classifier_t (t); remaining lanes are zero.
    w_heads = jnp.zeros((2 * d, HEAD_WIDTH), jnp.float32)
    w_heads = w_heads.at[:d, 0:c].set(p["w_cls"])
    w_heads = w_heads.at[:d, c:2 * c].set(p["w_kd"])
    w_heads = w_heads.at[d:, 2 * c:3 * c].set(p["w_cls_t"])
    w_heads = w_heads.astype(jnp.bfloat16)
    b_heads = jnp.zeros((1, HEAD_WIDTH), jnp.float32)
    b_heads = b_heads.at[:, 0:c].set(p["b_cls"])
    b_heads = b_heads.at[:, c:2 * c].set(p["b_kd"])
    b_heads = b_heads.at[:, 2 * c:3 * c].set(p["b_cls_t"])
    return {"w_enc": w_enc, "b_enc": b_enc, "w_heads": w_heads, "b_heads": b_heads}


if __name__ == "__main__":
    key = jax.random.PRNGKey(0)
    k_img, k_par = jax.random.split(key)

    B, H, W = 2, 16, 16
    din = 3 * H * W
    # PyTorch-style NCHW clip tensor: (B, S*3, H, W)
    img = jax.random.normal(k_img, (B, NUM_SEGMENTS * 3, H, W), jnp.float32)
    params = make_params(k_par, din)
    packed = pack_params(params)      # one-time packing, outside the forward

    pred, pred_kd, loss_kd = jax.jit(sdl_forward)(img, packed)
    jax.block_until_ready((pred, pred_kd, loss_kd))

    assert pred.shape == (B, CLASS_NUM)
    assert pred_kd.shape == (B, CLASS_NUM)
    assert loss_kd.shape == ()
    assert bool(jnp.isfinite(loss_kd))
    print("KERNEL_OK")
</pallas_src>

<mosaic_0001>
module attributes {stable_mosaic.version = 11 : i64} {
  func.func @_enc_pool_heads_kernel(%arg0: i32, %arg1: i32, %arg2: i32, %arg3: memref<16x256xbf16, #tpu.memory_space<vmem>>, %arg4: memref<256x512xbf16, #tpu.memory_space<vmem>>, %arg5: memref<1x512xf32, #tpu.memory_space<vmem>>, %arg6: memref<512x128xbf16, #tpu.memory_space<vmem>>, %arg7: memref<1x2x128xf32, #tpu.memory_space<vmem>>, %arg8: memref<16x512xf32, #tpu.memory_space<vmem>>) attributes {dimension_semantics = [#tpu.dimension_semantics<parallel>, #tpu.dimension_semantics<parallel>, #tpu.dimension_semantics<arbitrary>], iteration_bounds = array<i64: 1, 8, 3>, scalar_prefetch = 0 : i64, scratch_operands = 1 : i64, tpu.core_type = #tpu.core_type<tc>, window_params = [{transform_indices = @transform_0, window_bounds = array<i64: 16, 256>}, {transform_indices = @transform_1, window_bounds = array<i64: 256, 512>}, {transform_indices = @transform_2, window_bounds = array<i64: 1, 512>}, {transform_indices = @transform_3, window_bounds = array<i64: 512, 128>}, {transform_indices = @transform_4, window_bounds = array<i64: 1, 2, 128>}]} {
    %c0_i32 = arith.constant 0 : i32
    %0 = arith.cmpi eq, %arg2, %c0_i32 : i32
    %1 = arith.extui %0 : i1 to i32
    %c0_i32_0 = arith.constant 0 : i32
    %2 = arith.cmpi ne, %1, %c0_i32_0 : i32
    scf.if %2 {
      %cst_9 = arith.constant 0.000000e+00 : f32
      %12 = vector.broadcast %cst_9 : f32 to vector<16x512xf32>
      %c0_10 = arith.constant 0 : index
      %c0_11 = arith.constant 0 : index
      %13 = vector.load %arg8[%c0_10, %c0_11] : memref<16x512xf32, #tpu.memory_space<vmem>>, vector<16x512xf32>
      tpu.vector_store %arg8[%c0_10, %c0_11], %12 {strides = array<i32>} : memref<16x512xf32, #tpu.memory_space<vmem>>, vector<16x512xf32>,
    } else {
    }
    %c0 = arith.constant 0 : index
    %c0_1 = arith.constant 0 : index
    %3 = vector.load %arg8[%c0, %c0_1] : memref<16x512xf32, #tpu.memory_space<vmem>>, vector<16x512xf32>
    %c0_2 = arith.constant 0 : index
    %c0_3 = arith.constant 0 : index
    %4 = vector.load %arg3[%c0_2, %c0_3] : memref<16x256xbf16, #tpu.memory_space<vmem>>, vector<16x256xbf16>
    %c0_4 = arith.constant 0 : index
    %c0_5 = arith.constant 0 : index
    %5 = vector.load %arg4[%c0_4, %c0_5] : memref<256x512xbf16, #tpu.memory_space<vmem>>, vector<256x512xbf16>
    %cst = arith.constant dense<0.000000e+00> : vector<16x512xf32>
    %6 = tpu.matmul %4, %5, %cst {dimension_numbers = #tpu.dot_dimension_numbers<[1], [0], [0], [1], [0, 0, 1, 1], [], []>} : vector<16x256xbf16>, vector<256x512xbf16>, vector<16x512xf32> -> vector<16x512xf32>
    %7 = arith.addf %3, %6 : vector<16x512xf32>
    %c0_6 = arith.constant 0 : index
    %c0_7 = arith.constant 0 : index
    %8 = vector.load %arg8[%c0_6, %c0_7] : memref<16x512xf32, #tpu.memory_space<vmem>>, vector<16x512xf32>
    tpu.vector_store %arg8[%c0_6, %c0_7], %7 {strides = array<i32>} : memref<16x512xf32, #tpu.memory_space<vmem>>, vector<16x512xf32>,
    %c2_i32 = arith.constant 2 : i32
    %9 = arith.cmpi eq, %arg2, %c2_i32 : i32
    %10 = arith.extui %9 : i1 to i32
    %c0_i32_8 = arith.constant 0 : i32
    %11 = arith.cmpi ne, %10, %c0_i32_8 : i32
    scf.if %11 {
      %c0_9 = arith.constant 0 : index
      %c0_10 = arith.constant 0 : index
      %12 = vector.load %arg8[%c0_9, %c0_10] : memref<16x512xf32, #tpu.memory_space<vmem>>, vector<16x512xf32>
      %c0_11 = arith.constant 0 : index
      %c0_12 = arith.constant 0 : index
      %13 = vector.load %arg5[%c0_11, %c0_12] : memref<1x512xf32, #tpu.memory_space<vmem>>, vector<1x512xf32>
      %14 = vector.broadcast %13 : vector<1x512xf32> to vector<16x512xf32>
      %15 = arith.addf %12, %14 : vector<16x512xf32>
      %16 = vector.shape_cast %15 : vector<16x512xf32> to vector<2x8x512xf32>
      %cst_13 = arith.constant dense<0.000000e+00> : vector<2x512xf32>
      %17 = vector.multi_reduction <add>, %16, %cst_13 [1] : vector<2x8x512xf32> to vector<2x512xf32>
      %cst_14 = arith.constant 8.000000e+00 : f32
      %18 = vector.broadcast %cst_14 : f32 to vector<2x512xf32>
      %19 = arith.divf %17, %18 : vector<2x512xf32>
      %20 = arith.truncf %19 : vector<2x512xf32> to vector<2x512xbf16>
      %c0_15 = arith.constant 0 : index
      %c0_16 = arith.constant 0 : index
      %21 = vector.load %arg6[%c0_15, %c0_16] : memref<512x128xbf16, #tpu.memory_space<vmem>>, vector<512x128xbf16>
      %cst_17 = arith.constant dense<0.000000e+00> : vector<2x128xf32>
      %22 = tpu.matmul %20, %21, %cst_17 {dimension_numbers = #tpu.dot_dimension_numbers<[1], [0], [0], [1], [0, 0, 1, 1], [], []>} : vector<2x512xbf16>, vector<512x128xbf16>, vector<2x128xf32> -> vector<2x128xf32>
      %23 = vector.shape_cast %22 : vector<2x128xf32> to vector<1x2x128xf32>
      %c0_18 = arith.constant 0 : index
      %c0_19 = arith.constant 0 : index
      %c0_20 = arith.constant 0 : index
      %24 = vector.load %arg7[%c0_18, %c0_19, %c0_20] : memref<1x2x128xf32, #tpu.memory_space<vmem>>, vector<1x2x128xf32>
      tpu.vector_store %arg7[%c0_18, %c0_19, %c0_20], %23 {strides = array<i32>} : memref<1x2x128xf32, #tpu.memory_space<vmem>>, vector<1x2x128xf32>,
    } else {
    }
    return
  }
  func.func @transform_0(%arg0: i32, %arg1: i32, %arg2: i32) -> (i32, i32) {
    %c0_i32 = arith.constant 0 : i32
    return %arg0, %arg2 : i32, i32
  }
  func.func @transform_1(%arg0: i32, %arg1: i32, %arg2: i32) -> (i32, i32) {
    %c0_i32 = arith.constant 0 : i32
    return %arg2, %arg1 : i32, i32
  }
  func.func @transform_2(%arg0: i32, %arg1: i32, %arg2: i32) -> (i32, i32) {
    %c0_i32 = arith.constant 0 : i32
    %c0_i32_0 = arith.constant 0 : i32
    return %c0_i32, %arg1 : i32, i32
  }
  func.func @transform_3(%arg0: i32, %arg1: i32, %arg2: i32) -> (i32, i32) {
    %c0_i32 = arith.constant 0 : i32
    %c0_i32_0 = arith.constant 0 : i32
    return %arg1, %c0_i32 : i32, i32
  }
  func.func @transform_4(%arg0: i32, %arg1: i32, %arg2: i32) -> (i32, i32, i32) {
    %c0_i32 = arith.constant 0 : i32
    %c0_i32_0 = arith.constant 0 : i32
    return %arg1, %arg0, %c0_i32 : i32, i32, i32
  }
}

module attributes {stable_mosaic.version = 11 : i64} {
  func.func @_finalize_kd_kernel(%arg0: i32, %arg1: memref<8x2x128xf32, #tpu.memory_space<vmem>>, %arg2: memref<1x128xf32, #tpu.memory_space<vmem>>, %arg3: memref<2x128xf32, #tpu.memory_space<vmem>>, %arg4: memref<1x1xf32, #tpu.memory_space<vmem>>) attributes {dimension_semantics = [#tpu.dimension_semantics<arbitrary>], iteration_bounds = array<i64: 1>, scalar_prefetch = 0 : i64, scratch_operands = 0 : i64, tpu.core_type = #tpu.core_type<tc>, window_params = [{transform_indices = @transform_0, window_bounds = array<i64: 8, 2, 128>}, {pipeline_mode = #tpu.pipeline_mode<synchronous>, transform_indices = @transform_1, window_bounds = array<i64: 1, 128>}, {transform_indices = @transform_2, window_bounds = array<i64: 2, 128>}, {pipeline_mode = #tpu.pipeline_mode<synchronous>, transform_indices = @transform_3, window_bounds = array<i64: 1, 1>}]} {
    %c0_i32 = arith.constant 0 : i32
    %0 = arith.cmpi eq, %arg0, %c0_i32 : i32
    %1 = arith.extui %0 : i1 to i32
    %c0_i32_0 = arith.constant 0 : i32
    %2 = arith.cmpi ne, %1, %c0_i32_0 : i32
    scf.if %2 {
      %cst_19 = arith.constant 0.000000e+00 : f32
      %47 = vector.broadcast %cst_19 : f32 to vector<1x1xf32>
      %c0_20 = arith.constant 0 : index
      %c0_21 = arith.constant 0 : index
      %48 = vector.load %arg4[%c0_20, %c0_21] : memref<1x1xf32, #tpu.memory_space<vmem>>, vector<1x1xf32>
      tpu.vector_store %arg4[%c0_20, %c0_21], %47 {strides = array<i32>} : memref<1x1xf32, #tpu.memory_space<vmem>>, vector<1x1xf32>,
    } else {
    }
    %c0 = arith.constant 0 : index
    %c0_1 = arith.constant 0 : index
    %c0_2 = arith.constant 0 : index
    %3 = vector.load %arg1[%c0, %c0_1, %c0_2] : memref<8x2x128xf32, #tpu.memory_space<vmem>>, vector<8x2x128xf32>
    %cst = arith.constant dense<0.000000e+00> : vector<2x128xf32>
    %4 = vector.multi_reduction <add>, %3, %cst [0] : vector<8x2x128xf32> to vector<2x128xf32>
    %c0_3 = arith.constant 0 : index
    %c0_4 = arith.constant 0 : index
    %5 = vector.load %arg2[%c0_3, %c0_4] : memref<1x128xf32, #tpu.memory_space<vmem>>, vector<1x128xf32>
    %6 = vector.broadcast %5 : vector<1x128xf32> to vector<2x128xf32>
    %7 = arith.addf %4, %6 : vector<2x128xf32>
    %c0_5 = arith.constant 0 : index
    %c0_6 = arith.constant 0 : index
    %8 = vector.load %arg3[%c0_5, %c0_6] : memref<2x128xf32, #tpu.memory_space<vmem>>, vector<2x128xf32>
    tpu.vector_store %arg3[%c0_5, %c0_6], %7 {strides = array<i32>} : memref<2x128xf32, #tpu.memory_space<vmem>>, vector<2x128xf32>,
    %9 = vector.extract_strided_slice %7 {offsets = [0, 16], sizes = [2, 16], strides = [1, 1]} : vector<2x128xf32> to vector<2x16xf32>
    %10 = vector.extract_strided_slice %7 {offsets = [0, 32], sizes = [2, 16], strides = [1, 1]} : vector<2x128xf32> to vector<2x16xf32>
    %cst_7 = arith.constant 5.000000e-01 : f32
    %11 = vector.broadcast %cst_7 : f32 to vector<2x16xf32>
    %12 = arith.mulf %9, %11 : vector<2x16xf32>
    %cst_8 = arith.constant 5.000000e-01 : f32
    %13 = vector.broadcast %cst_8 : f32 to vector<2x16xf32>
    %14 = arith.mulf %10, %13 : vector<2x16xf32>
    %cst_9 = arith.constant dense<0xFF800000> : vector<2xf32>
    %15 = vector.multi_reduction <maximumf>, %12, %cst_9 [1] : vector<2x16xf32> to vector<2xf32>
    %16 = vector.shape_cast %15 : vector<2xf32> to vector<2x1xf32>
    %17 = vector.broadcast %16 : vector<2x1xf32> to vector<2x16xf32>
    %18 = arith.subf %12, %17 : vector<2x16xf32>
    %cst_10 = arith.constant dense<0xFF800000> : vector<2xf32>
    %19 = vector.multi_reduction <maximumf>, %14, %cst_10 [1] : vector<2x16xf32> to vector<2xf32>
    %20 = vector.shape_cast %19 : vector<2xf32> to vector<2x1xf32>
    %21 = vector.broadcast %20 : vector<2x1xf32> to vector<2x16xf32>
    %22 = arith.subf %14, %21 : vector<2x16xf32>
    %23 = math.exp %18 : vector<2x16xf32>
    %cst_11 = arith.constant dense<0.000000e+00> : vector<2xf32>
    %24 = vector.multi_reduction <add>, %23, %cst_11 [1] : vector<2x16xf32> to vector<2xf32>
    %25 = vector.shape_cast %24 : vector<2xf32> to vector<2x1xf32>
    %26 = math.log %25 : vector<2x1xf32>
    %27 = vector.broadcast %26 : vector<2x1xf32> to vector<2x16xf32>
    %28 = arith.subf %18, %27 : vector<2x16xf32>
    %29 = math.exp %22 : vector<2x16xf32>
    %cst_12 = arith.constant dense<0.000000e+00> : vector<2xf32>
    %30 = vector.multi_reduction <add>, %29, %cst_12 [1] : vector<2x16xf32> to vector<2xf32>
    %31 = vector.shape_cast %30 : vector<2xf32> to vector<2x1xf32>
    %32 = math.log %31 : vector<2x1xf32>
    %33 = vector.broadcast %32 : vector<2x1xf32> to vector<2x16xf32>
    %34 = arith.subf %22, %33 : vector<2x16xf32>
    %35 = math.exp %34 : vector<2x16xf32>
    %36 = arith.subf %34, %28 : vector<2x16xf32>
    %37 = arith.mulf %35, %36 : vector<2x16xf32>
    %38 = vector.shape_cast %37 : vector<2x16xf32> to vector<1x2x16xf32>
    %cst_13 = arith.constant dense<0.000000e+00> : vector<1xf32>
    %39 = vector.multi_reduction <add>, %38, %cst_13 [1, 2] : vector<1x2x16xf32> to vector<1xf32>
    %40 = vector.shape_cast %39 : vector<1xf32> to vector<1x1x1xf32>
    %41 = vector.extract %40[0, 0, 0] : f32 from vector<1x1x1xf32>
    %cst_14 = arith.constant 2.000000e+00 : f32
    %42 = arith.mulf %41, %cst_14 : f32
    %c0_15 = arith.constant 0 : index
    %c0_16 = arith.constant 0 : index
    %43 = vector.load %arg4[%c0_15, %c0_16] : memref<1x1xf32, #tpu.memory_space<vmem>>, vector<1x1xf32>
    %44 = vector.broadcast %42 : f32 to vector<1x1xf32>
    %45 = arith.addf %43, %44 : vector<1x1xf32>
    %c0_17 = arith.constant 0 : index
    %c0_18 = arith.constant 0 : index
    %46 = vector.load %arg4[%c0_17, %c0_18] : memref<1x1xf32, #tpu.memory_space<vmem>>, vector<1x1xf32>
    tpu.vector_store %arg4[%c0_17, %c0_18], %45 {strides = array<i32>} : memref<1x1xf32, #tpu.memory_space<vmem>>, vector<1x1xf32>,
    return
  }
  func.func @transform_0(%arg0: i32) -> (i32, i32, i32) {
    %c0_i32 = arith.constant 0 : i32
    %c0_i32_0 = arith.constant 0 : i32
    %c0_i32_1 = arith.constant 0 : i32
    return %c0_i32, %arg0, %c0_i32_0 : i32, i32, i32
  }
  func.func @transform_1(%arg0: i32) -> (i32, i32) {
    %c0_i32 = arith.constant 0 : i32
    %c0_i32_0 = arith.constant 0 : i32
    %c0_i32_1 = arith.constant 0 : i32
    return %c0_i32, %c0_i32_0 : i32, i32
  }
  func.func @transform_2(%arg0: i32) -> (i32, i32) {
    %c0_i32 = arith.constant 0 : i32
    %c0_i32_0 = arith.constant 0 : i32
    return %arg0, %c0_i32 : i32, i32
  }
  func.func @transform_3(%arg0: i32) -> (i32, i32) {
    %c0_i32 = arith.constant 0 : i32
    %c0_i32_0 = arith.constant 0 : i32
    %c0_i32_1 = arith.constant 0 : i32
    return %c0_i32, %c0_i32_0 : i32, i32
  }
}

</mosaic_0001>

<llo_original>
// kernel: sdl_forward.3
$region0: #{sdl_forward.3}
  #allocation0 [shape = 'u32[]', space=smem, size = 0x4, offset = 0x4, fixed_abs, tag = 'smem constant byte address 0x4 - core index']
  #allocation1 [shape = 'u32[144,128]{1,0:T(1,128)}', space=vmem, size = 0x12000, scoped, tag = 'internal scratch']
  %s0 = inlined_call_operand.vmem [shape: f32[8,2,128], index: 0, kind: input, shape index: {}]
  %s1 = inlined_call_operand.vmem [shape: f32[1,128], index: 1, kind: input, shape index: {}]
  %s2 = inlined_call_operand.vmem [shape: f32[2,128], index: 2, kind: output, shape index: {0}]
  %s3 = inlined_call_operand.hbm [shape: f32[1,1], index: 3, kind: output, shape index: {1}]
  %4 = xla_tuple %s2, %s3
  %s5 = sld [smem:[#allocation0]]
  $region30: #{sdl_forward.3} parent=0
    _
  %s7 = ssub.s32 1, %s5
  %s8 = scalar_select 0, %s7, %s5
  $region1: #{sdl_forward.3} parent=0
    #allocation2 [shape = 'u8[512]{0}', space=vmem, size = 0x400, scoped, tag = 'output window, operand 1, single buffered']
    #allocation3 [shape = 's32[1]{0}', space=sflag, size = 0x4, scoped, tag = 'scoped memory for sdl_forward.3']
    %9 = vsyncpa [#allocation3], 0
    // Predicated region
    $region2: #{sdl_forward.3} parent=1 // pred_check
      _
    $region3: #{sdl_forward.3} parent=1 // pred_check_branch
      %11 = sbr.rel (0) target = $region5
    $region4: #{sdl_forward.3} parent=1 // pred_region
      _
    $region5: #{sdl_forward.3} parent=1 // pred_fallthru
      _
    // Predicated region
    $region6: #{sdl_forward.3} parent=1 // pred_check
      _
    $region7: #{sdl_forward.3} parent=1 // pred_check_branch
      %13 = sbr.rel (0) target = $region9
    $region8: #{sdl_forward.3} parent=1 // pred_region
      _
    $region9: #{sdl_forward.3} parent=1 // pred_fallthru
      _
    %p14 = scmp.eq.s32.totalorder 0, 0
    // Predicated region
    $region10: #{sdl_forward.3} parent=1 // pred_check
      %p15 = pneg %p14
    $region11: #{sdl_forward.3} parent=1 // pred_check_branch
      %17 = sbr.rel (%p15) target = $region13
    $region12: #{sdl_forward.3} parent=1 // pred_region
      %vm18 = vcmask 0
      %19 = vst.msk [vmem:[#allocation2] sm:$0x1] %vm18, 0.0
    $region13: #{sdl_forward.3} parent=1 // pred_fallthru
      _
    %v20 = vld [vmem:[%s0] sm:$0x3]
    %v21 = vld [vmem:[%s0 + $0x2] sm:$0x3]
    %v22 = vld [vmem:[%s0 + $0x4] sm:$0x3]
    %v23 = vld [vmem:[%s0 + $0x6] sm:$0x3]
    %v24 = vld [vmem:[%s0 + $0x8] sm:$0x3]
    %v25 = vld [vmem:[%s0 + $0xa] sm:$0x3]
    %v26 = vld [vmem:[%s0 + $0xc] sm:$0x3]
    %v27 = vld [vmem:[%s0 + $0xe] sm:$0x3]
    %vm28 = vcmask 1041408
    %v29 = vsel %vm28, %v20, 0.0
    %v30 = vsel %vm28, %v21, 0.0
    %v31 = vadd.f32 %v29, %v30
    %v32 = vsel %vm28, %v22, 0.0
    %v33 = vadd.f32 %v31, %v32
    %v34 = vsel %vm28, %v23, 0.0
    %v35 = vadd.f32 %v33, %v34
    %v36 = vsel %vm28, %v24, 0.0
    %v37 = vadd.f32 %v35, %v36
    %v38 = vsel %vm28, %v25, 0.0
    %v39 = vadd.f32 %v37, %v38
    %v40 = vsel %vm28, %v26, 0.0
    %v41 = vadd.f32 %v39, %v40
    %v42 = vsel %vm28, %v27, 0.0
    %v43 = vadd.f32 %v41, %v42
    %v44 = vld [vmem:[%s1] sm:$0x1]
    %v46 = vlaneseq
    %v47 = vshrl.u32 %v46, 7
    %v48 = vsub.s32 0, %v47
    %v49 = vrot.slane %v44, %v48
    %v51 = vadd.f32 %v43, %v49
    %52 = vst [vmem:[%s2] sm:$0x3] %v51
    %v53 = vmul.f32 %v51, 0.5
    %vm54 = vcmask 255104
    %v55 = vsel %vm54, %v53, -inf
    %56 = vmax.xlane.f32.xlu0 %v55
    %v57 = vpop.xlane.xlu0 %56
    %v58 = vsub.f32 %v53, %v57
    %vm59 = vcmask 386304
    %v60 = vsel %vm59, %v53, -inf
    %61 = vmax.xlane.f32.xlu0 %v60
    %v62 = vpop.xlane.xlu0 %61
    %v63 = vsub.f32 %v53, %v62
    %v64 = vmul.f32 %v58, 1.442695
    %v65 = vpow.pop %v64
    %67 = vrot.lane.b32.xlu0 %v65, 112
    %v68 = vpop.permute.xlu0 %67
    %vm70 = vcmask 123904
    %v71 = vsel %vm70, %v68, 0.0
    %72 = vadd.xlane.f32.xlu0 %v71
    %v73 = vpop.xlane.xlu0 %72
    %v74 = vlog2.pop %v73
    %v75 = vmul.f32 %v74, 0.6931472
    %v76 = vsub.f32 %v58, %v75
    %v77 = vmul.f32 %v63, 1.442695
    %v78 = vpow.pop %v77
    %80 = vrot.lane.b32.xlu0 %v78, 96
    %v81 = vpop.permute.xlu0 %80
    %v83 = vsel %vm70, %v81, 0.0
    %84 = vadd.xlane.f32.xlu0 %v83
    %v85 = vpop.xlane.xlu0 %84
    %v86 = vlog2.pop %v85
    %v87 = vmul.f32 %v86, 0.6931472
    %v88 = vsub.f32 %v63, %v87
    %v89 = vmul.f32 %v88, 1.442695
    %v90 = vpow.pop %v89
    %92 = vrot.lane.b32.xlu0 %v76, 16
    %v93 = vpop.permute.xlu0 %92
    %v95 = vsub.f32 %v88, %v93
    %v96 = vmul.f32 %v90, %v95
    %98 = vrot.lane.b32.xlu0 %v96, 96
    %v99 = vpop.permute.xlu0 %98
    %v101 = vsel %vm70, %v99, 0.0
    %102 = vadd.xlane.f32.xlu0 %v101
    %v103 = vpop.xlane.xlu0 %102
    %v104 = vrot.slane %v103, 4
    %v105 = vadd.f32 %v103, %v104
    %v106 = vrot.slane %v105, 2
    %v107 = vadd.f32 %v105, %v106
    %v108 = vrot.slane %v107, 1
    %v109 = vadd.f32 %v107, %v108
    %s110 = vtos %v109
    %s111 = smul.f32 %s110, 2.0
    %v112 = vld [vmem:[#allocation2] sm:$0x1]
    %v113 = vstv %s111
    %v114 = vadd.f32 %v112, %v113
    %vm115 = vcmask 0
    %116 = vst.msk [vmem:[#allocation2] sm:$0x1] %vm115, %v114
    // Predicated region
    $region14: #{sdl_forward.3} parent=1 // pred_check
      _
    $region15: #{sdl_forward.3} parent=1 // pred_check_branch
      %118 = sbr.rel (0) target = $region17
    $region16: #{sdl_forward.3} parent=1 // pred_region
      _
    $region17: #{sdl_forward.3} parent=1 // pred_fallthru
      _
    // Predicated region
    $region18: #{sdl_forward.3} parent=1 // pred_check
      _
    $region19: #{sdl_forward.3} parent=1 // pred_check_branch
      %120 = sbr.rel (0) target = $region21
    $region20: #{sdl_forward.3} parent=1 // pred_region
      %s122 = ssub.s32 16, 16
      %123 = vsyncadd [#allocation3], %s122
      %s125 = sshll.u32 [#allocation2], 4
      %s126 = int_to_ptr.vmem [resolvable:$true] %s125
      %128 = dma.vmem_to_hbm [thread:$0]  %s126, 16, %s3, [#allocation3]
    $region21: #{sdl_forward.3} parent=1 // pred_fallthru
      _
    // Predicated region
    $region22: #{sdl_forward.3} parent=1 // pred_check
      _
    $region23: #{sdl_forward.3} parent=1 // pred_check_branch
      %130 = sbr.rel (0) target = $region25
    $region24: #{sdl_forward.3} parent=1 // pred_region
      _
    $region25: #{sdl_forward.3} parent=1 // pred_fallthru
      _
    // Predicated region
    $region26: #{sdl_forward.3} parent=1 // pred_check
      _
    $region27: #{sdl_forward.3} parent=1 // pred_check_branch
      %132 = sbr.rel (0) target = $region29
    $region28: #{sdl_forward.3} parent=1 // pred_region
      %133 = dma.done [#allocation3], 16
    $region29: #{sdl_forward.3} parent=1 // pred_fallthru
      _
    %134 = vsyncpa [#allocation3], 1

// kernel: sdl_forward.2
$region0: #{sdl_forward.2}
  #allocation0 [shape = 'u32[]', space=smem, size = 0x4, offset = 0x4, fixed_abs, tag = 'smem constant byte address 0x4 - core index']
  #allocation1 [shape = 'u32[144,128]{1,0:T(1,128)}', space=vmem, size = 0x12000, scoped, tag = 'internal scratch']
  #allocation2 [shape = 'f32[16,512]{1,0:T(8,128)}', space=vmem, size = 0x8000, scoped, tag = 'scratch operand']
  %s0 = inlined_call_operand.vmem [shape: bf16[16,768], index: 0, kind: input, shape index: {}]
  %s1 = inlined_call_operand.hbm [shape: bf16[768,4096], index: 1, kind: input, shape index: {}]
  %s2 = inlined_call_operand.hbm [shape: f32[1,4096], index: 2, kind: input, shape index: {}]
  %s3 = inlined_call_operand.hbm [shape: bf16[4096,128], index: 3, kind: input, shape index: {}]
  %s4 = inlined_call_operand.vmem [shape: f32[8,2,128], index: 4, kind: output, shape index: {}]
  %s5 = sld [smem:[#allocation0]]
  $region107: #{sdl_forward.2} parent=0
    _
  %s7 = ssub.s32 1, %s5
  %s8 = scalar_select 0, %s7, %s5
  $region1: #{sdl_forward.2} parent=0
    #allocation3 [shape = 'u8[16384]{0}', space=vmem, size = 0x4000, scoped, tag = 'input window, operand 0']
    #allocation4 [shape = 'u8[524288]{0}', space=vmem, size = 0x80000, scoped, tag = 'input window, operand 1']
    #allocation5 [shape = 's32[2]{0}', space=sflag, size = 0x8, scoped, tag = 'scoped memory for sdl_forward.2']
    #allocation6 [shape = 'u8[4096]{0}', space=vmem, size = 0x1000, scoped, tag = 'input window, operand 2']
    #allocation7 [shape = 's32[2]{0}', space=sflag, size = 0x8, scoped, tag = 'scoped memory for sdl_forward.2']
    #allocation8 [shape = 'u8[262144]{0}', space=vmem, size = 0x40000, scoped, tag = 'input window, operand 3']
    %9 = vsyncpa [#allocation5], 0
    %s10 = scalar_lea.sflag [#allocation5], 1
    %11 = vsyncpa %s10, 0
    %12 = vsyncpa [#allocation7], 0
    %s13 = scalar_lea.sflag [#allocation7], 1
    %14 = vsyncpa %s13, 0
    loop: start=0, step=1, limit=26
    $region2: #{sdl_forward.2} parent=1 // loop_pre_header
      _
    $region3: #{sdl_forward.2} parent=1 // loop_header
      %s16 = sphi 0, %s20
      %p17 = scmp.ge.s32.totalorder %s16, 26
      %s23 = sphi 0, %s42
      %s24 = sphi 0, %s38
      %s25 = sphi 0, %s34
      %s26 = sphi 0, %s23
      %s27 = sphi 0, %s24
      %s28 = sphi 0, %s25
      %s29 = sphi 0, %s26
      %s30 = sphi 0, %s27
      %s31 = sphi 0, %s28
      %s47 = sphi 0, %s49
      %s50 = sphi 0, %s47
      %s51 = sphi 0, %s50
      %s67 = sphi 0, %s51
      %s75 = sphi 0, %s77
      %s78 = sphi 0, %s75
      %s79 = sphi 0, %s78
      %s95 = sphi 0, %s79
      %s101 = sphi 0, %s103
      %s104 = sphi 0, %s101
      %s105 = sphi 0, %s104
      %s121 = sphi 0, %s105
      %s127 = sphi 0, %s129
      %s130 = sphi 0, %s127
      %s131 = sphi 0, %s130
      %s147 = sphi 0, %s131
      %s155 = sphi 0, %s157
      %s158 = sphi 0, %s155
      %s159 = sphi 0, %s158
      %s175 = sphi 0, %s159
    $region4: #{sdl_forward.2} parent=1 // loop_header_branch
      %19 = sbr.rel (%p17) target = $region8
    $region5: #{sdl_forward.2} parent=1 // loop_body
      %s21 = ssub.s32 %s16, 1
      %s22 = ssub.s32 %s16, 2
      %s32 = sadd.s32 1, %s25
      %p33 = scmp.ge.s32.totalorder %s32, 3
      %s34 = scalar_select %p33, 0, %s32
      %s35 = sadd.s32 1, %s24
      %s36 = scalar_select %p33, %s35, %s24
      %p37 = scmp.ge.s32.totalorder %s36, 8
      %s38 = scalar_select %p37, 0, %s36
      %s39 = sadd.s32 1, %s23
      %s40 = scalar_select %p37, %s39, %s23
      %p41 = scmp.ge.s32.totalorder %s40, 1
      %s42 = scalar_select %p41, 0, %s40
      %s43 = ssub.s32 %s23, %s42
      %s44 = ssub.s32 %s25, %s34
      %s45 = sor.u32 %s43, %s44
      %p46 = scmp.eq.s32.totalorder %s45, 0
      %s48 = sadd.s32 %s47, 1
      %s49 = scalar_select %p46, %s47, %s48
      %p52 = pneg %p46
      %p53 = scmp.eq.s32.totalorder %s16, 23
      %p54 = por %p52, %p53
      %p55 = scmp.ne.s32.totalorder %s47, %s50
      %p56 = scmp.eq.s32.totalorder %s16, 0
      %p57 = por %p55, %p56
      %p58 = scmp.ne.s32.totalorder %s47, %s50
      %p59 = scmp.eq.s32.totalorder %s21, 23
      %p60 = por %p58, %p59
      %p61 = scmp.ne.s32.totalorder %s50, %s51
      %p62 = scmp.eq.s32.totalorder %s21, 0
      %p63 = por %p61, %p62
      %p64 = scmp.ne.s32.totalorder %s50, %s51
      %p65 = scmp.eq.s32.totalorder %s22, 23
      %p66 = por %p64, %p65
      %p68 = scmp.ne.s32.totalorder %s51, %s67
      %p69 = scmp.eq.s32.totalorder %s22, 0
      %p70 = por %p68, %p69
      %s71 = ssub.s32 %s25, %s34
      %s72 = ssub.s32 %s24, %s38
      %s73 = sor.u32 %s71, %s72
      %p74 = scmp.eq.s32.totalorder %s73, 0
      %s76 = sadd.s32 %s75, 1
      %s77 = scalar_select %p74, %s75, %s76
      %p80 = pneg %p74
      %p81 = scmp.eq.s32.totalorder %s16, 23
      %p82 = por %p80, %p81
      %p83 = scmp.ne.s32.totalorder %s75, %s78
      %p84 = scmp.eq.s32.totalorder %s16, 0
      %p85 = por %p83, %p84
      %p86 = scmp.ne.s32.totalorder %s75, %s78
      %p87 = scmp.eq.s32.totalorder %s21, 23
      %p88 = por %p86, %p87
      %p89 = scmp.ne.s32.totalorder %s78, %s79
      %p90 = scmp.eq.s32.totalorder %s21, 0
      %p91 = por %p89, %p90
      %p92 = scmp.ne.s32.totalorder %s78, %s79
      %p93 = scmp.eq.s32.totalorder %s22, 23
      %p94 = por %p92, %p93
      %p96 = scmp.ne.s32.totalorder %s79, %s95
      %p97 = scmp.eq.s32.totalorder %s22, 0
      %p98 = por %p96, %p97
      %s99 = ssub.s32 %s24, %s38
      %p100 = scmp.eq.s32.totalorder %s99, 0
      %s102 = sadd.s32 %s101, 1
      %s103 = scalar_select %p100, %s101, %s102
      %p106 = pneg %p100
      %p107 = scmp.eq.s32.totalorder %s16, 23
      %p108 = por %p106, %p107
      %p109 = scmp.ne.s32.totalorder %s101, %s104
      %p110 = scmp.eq.s32.totalorder %s16, 0
      %p111 = por %p109, %p110
      %p112 = scmp.ne.s32.totalorder %s101, %s104
      %p113 = scmp.eq.s32.totalorder %s21, 23
      %p114 = por %p112, %p113
      %p115 = scmp.ne.s32.totalorder %s104, %s105
      %p116 = scmp.eq.s32.totalorder %s21, 0
      %p117 = por %p115, %p116
      %p118 = scmp.ne.s32.totalorder %s104, %s105
      %p119 = scmp.eq.s32.totalorder %s22, 23
      %p120 = por %p118, %p119
      %p122 = scmp.ne.s32.totalorder %s105, %s121
      %p123 = scmp.eq.s32.totalorder %s22, 0
      %p124 = por %p122, %p123
      %s125 = ssub.s32 %s24, %s38
      %p126 = scmp.eq.s32.totalorder %s125, 0
      %s128 = sadd.s32 %s127, 1
      %s129 = scalar_select %p126, %s127, %s128
      %p132 = pneg %p126
      %p133 = scmp.eq.s32.totalorder %s16, 23
      %p134 = por %p132, %p133
      %p135 = scmp.ne.s32.totalorder %s127, %s130
      %p136 = scmp.eq.s32.totalorder %s16, 0
      %p137 = por %p135, %p136
      %p138 = scmp.ne.s32.totalorder %s127, %s130
      %p139 = scmp.eq.s32.totalorder %s21, 23
      %p140 = por %p138, %p139
      %p141 = scmp.ne.s32.totalorder %s130, %s131
      %p142 = scmp.eq.s32.totalorder %s21, 0
      %p143 = por %p141, %p142
      %p144 = scmp.ne.s32.totalorder %s130, %s131
      %p145 = scmp.eq.s32.totalorder %s22, 23
      %p146 = por %p144, %p145
      %p148 = scmp.ne.s32.totalorder %s131, %s147
      %p149 = scmp.eq.s32.totalorder %s22, 0
      %p150 = por %p148, %p149
      %s151 = ssub.s32 %s24, %s38
      %s152 = ssub.s32 %s23, %s42
      %s153 = sor.u32 %s151, %s152
      %p154 = scmp.eq.s32.totalorder %s153, 0
      %s156 = sadd.s32 %s155, 1
      %s157 = scalar_select %p154, %s155, %s156
      %p160 = pneg %p154
      %p161 = scmp.eq.s32.totalorder %s16, 23
      %p162 = por %p160, %p161
      %p163 = scmp.ne.s32.totalorder %s155, %s158
      %p164 = scmp.eq.s32.totalorder %s16, 0
      %p165 = por %p163, %p164
      %p166 = scmp.ne.s32.totalorder %s155, %s158
      %p167 = scmp.eq.s32.totalorder %s21, 23
      %p168 = por %p166, %p167
      %p169 = scmp.ne.s32.totalorder %s158, %s159
      %p170 = scmp.eq.s32.totalorder %s21, 0
      %p171 = por %p169, %p170
      %p172 = scmp.ne.s32.totalorder %s158, %s159
      %p173 = scmp.eq.s32.totalorder %s22, 23
      %p174 = por %p172, %p173
      %p176 = scmp.ne.s32.totalorder %s159, %s175
      %p177 = scmp.eq.s32.totalorder %s22, 0
      %p178 = por %p176, %p177
      %p179 = scmp.le.s32.totalorder 1, %s16
      %p180 = scmp.lt.s32.totalorder %s16, 25
      %p181 = pnand %p179, %p180
      %p182 = pneg %p181
      // Predicated region
      $region9: #{sdl_forward.2} parent=5 // pred_check
        _
      $region10: #{sdl_forward.2} parent=5 // pred_check_branch
        %184 = sbr.rel (%p181) target = $region12
      $region11: #{sdl_forward.2} parent=5 // pred_region
        %s185 = ssub.s32 %s16, 1
      $region12: #{sdl_forward.2} parent=5 // pred_fallthru
        _
      %p186 = scmp.lt.s32.totalorder %s16, 24
      // Predicated region
      $region13: #{sdl_forward.2} parent=5 // pred_check
        %p187 = pneg %p186
      $region14: #{sdl_forward.2} parent=5 // pred_check_branch
        %189 = sbr.rel (%p187) target = $region16
      $region15: #{sdl_forward.2} parent=5 // pred_region
        // Predicated region
        $region17: #{sdl_forward.2} parent=15 // pred_check
          %p190 = pneg %p57
        $region18: #{sdl_forward.2} parent=15 // pred_check_branch
          %192 = sbr.rel (%p190) target = $region20
        $region19: #{sdl_forward.2} parent=15 // pred_region
          %s193 = sand.u32 %s47, 1
          %s194 = sand.u32 %s47, 1
          %s195 = smul.addr %s194, 16
          %s196 = scalar_lea.vmem [#allocation3], %s195
          %s197 = smul.u32 2, %s23
          %s198 = smul.u32 2, %s25
          %s199 = smul.addr %s197, 6
          %s200 = sadd.s32 %s198, %s199
          %s201 = smul.addr %s200, 4
          %s202 = scalar_lea.vmem %s0, %s201
          // Predicated region
          $region21: #{sdl_forward.2} parent=19 // pred_check
            _
          $region22: #{sdl_forward.2} parent=19 // pred_check_branch
            %204 = sbr.rel (0) target = $region24
          $region23: #{sdl_forward.2} parent=19 // pred_region
            // Predicated region
            $region25: #{sdl_forward.2} parent=23 // pred_check
              _
            $region26: #{sdl_forward.2} parent=23 // pred_check_branch
              %206 = sbr.rel (0) target = $region28
            $region27: #{sdl_forward.2} parent=23 // pred_region
              // Predicated region
              $region40: #{sdl_forward.2} parent=27 // pred_check
                _
              $region41: #{sdl_forward.2} parent=27 // pred_check_branch
                %224 = sbr.rel (0) target = $region43
              $region42: #{sdl_forward.2} parent=27 // pred_region
                loop: start=0, step=1, limit=1
                $region44: #{sdl_forward.2} parent=42 // loop_pre_header
                  _
                $region45: #{sdl_forward.2} parent=42 // loop_header
                  %s226 = sphi 0, %s230
                  %p227 = scmp.ge.s32.totalorder %s226, 1
                  %s231 = sphi %s202, %s202
                  %s232 = sphi %s196, %s196
                $region46: #{sdl_forward.2} parent=42 // loop_header_branch
                  %229 = sbr.rel (%p227) target = $region50
                $region47: #{sdl_forward.2} parent=42 // loop_body
                  %v233 = vld [vmem:[%s231] sm:$0xff]
                  %234 = vst [vmem:[%s232] sm:$0xff] %v233
                  %v235 = vld [vmem:[%s231 + $0x18] sm:$0xff]
                  %236 = vst [vmem:[%s232 + $0x8] sm:$0xff] %v235
                $region48: #{sdl_forward.2} parent=42 // loop_footer
                  %s230 = sadd.s32 1, %s226
                $region49: #{sdl_forward.2} parent=42 // loop_footer_branch
                  %225 = sbr.rel target = $region45
                $region50: #{sdl_forward.2} parent=42 // loop_exit
                  _
              $region43: #{sdl_forward.2} parent=27 // pred_fallthru
                _
              // Predicated region
              $region51: #{sdl_forward.2} parent=27 // pred_check
                _
              $region52: #{sdl_forward.2} parent=27 // pred_check_branch
                %238 = sbr.rel target = $region54
              $region53: #{sdl_forward.2} parent=27 // pred_region
                _
              $region54: #{sdl_forward.2} parent=27 // pred_fallthru
                _
            $region28: #{sdl_forward.2} parent=23 // pred_fallthru
              _
            // Predicated region
            $region29: #{sdl_forward.2} parent=23 // pred_check
              _
            $region30: #{sdl_forward.2} parent=23 // pred_check_branch
              %208 = sbr.rel target = $region32
            $region31: #{sdl_forward.2} parent=23 // pred_region
              %s210 = ssub.s32 256, 1
              loop: start=0, step=1, limit=1
              $region33: #{sdl_forward.2} parent=31 // loop_pre_header
                _
              $region34: #{sdl_forward.2} parent=31 // loop_header
                %s212 = sphi 0, %s216
                %p213 = scmp.ge.s32.totalorder %s212, 1
                %s217 = sphi %s202, %s202
                %s218 = sphi %s196, %s196
              $region35: #{sdl_forward.2} parent=31 // loop_header_branch
                %215 = sbr.rel (%p213) target = $region39
              $region36: #{sdl_forward.2} parent=31 // loop_body
                %v219 = vld [vmem:[%s217] sm:%s210]
                %220 = vst [vmem:[%s218] sm:%s210] %v219
                %v221 = vld [vmem:[%s217 + $0x18] sm:%s210]
                %222 = vst [vmem:[%s218 + $0x8] sm:%s210] %v221
              $region37: #{sdl_forward.2} parent=31 // loop_footer
                %s216 = sadd.s32 1, %s212
              $region38: #{sdl_forward.2} parent=31 // loop_footer_branch
                %211 = sbr.rel target = $region34
              $region39: #{sdl_forward.2} parent=31 // loop_exit
                _
            $region32: #{sdl_forward.2} parent=23 // pred_fallthru
              _
          $region24: #{sdl_forward.2} parent=19 // pred_fallthru
            _
          %239 = vnop
        $region20: #{sdl_forward.2} parent=15 // pred_fallthru
          _
        // Predicated region
        $region55: #{sdl_forward.2} parent=15 // pred_check
          %p240 = pneg %p85
        $region56: #{sdl_forward.2} parent=15 // pred_check_branch
          %242 = sbr.rel (%p240) target = $region58
        $region57: #{sdl_forward.2} parent=15 // pred_region
          %s243 = sand.u32 %s75, 1
          %s244 = scalar_lea.sflag [#allocation5], %s243
          %s245 = sand.u32 %s75, 1
          %s246 = smul.addr %s245, 512
          %s247 = scalar_lea.vmem [#allocation4], %s246
          %s248 = smul.u32 32, %s25
          %s249 = smul.u32 4, %s24
          %s251 = ssub.s32 8192, 8192
          %252 = vsyncadd %s244, %s251
          %s253 = smul.addr %s248, 32
          %s254 = sadd.s32 %s249, %s253
          %s255 = smul.addr %s254, 64
          %s256 = scalar_lea.hbm %s1, %s255
          %s257 = sshll.u32 %s247, 4
          %s258 = int_to_ptr.vmem [resolvable:$true] %s257
          %263 = dma.hbm_to_vmem [thread:$0]  %s256, 8192, %s258, %s244, 2048, 256, 16
        $region58: #{sdl_forward.2} parent=15 // pred_fallthru
          _
        // Predicated region
        $region59: #{sdl_forward.2} parent=15 // pred_check
          %p264 = pneg %p111
        $region60: #{sdl_forward.2} parent=15 // pred_check_branch
          %266 = sbr.rel (%p264) target = $region62
        $region61: #{sdl_forward.2} parent=15 // pred_region
          %s267 = sand.u32 %s16, 1
          %s268 = scalar_lea.sflag [#allocation7], %s267
          %s269 = sand.u32 %s101, 1
          %s270 = smul.addr %s269, 4
          %s271 = scalar_lea.vmem [#allocation6], %s270
          %s272 = smul.u32 4, %s24
          %s274 = ssub.s32 64, 64
          %275 = vsyncadd %s268, %s274
          %s276 = smul.addr %s272, 16
          %s277 = scalar_lea.hbm %s2, %s276
          %s279 = sshll.u32 %s271, 4
          %s280 = int_to_ptr.vmem [resolvable:$true] %s279
          %282 = dma.hbm_to_vmem [thread:$0]  %s277, 64, %s280, %s268
        $region62: #{sdl_forward.2} parent=15 // pred_fallthru
          _
        // Predicated region
        $region63: #{sdl_forward.2} parent=15 // pred_check
          %p283 = pneg %p137
        $region64: #{sdl_forward.2} parent=15 // pred_check_branch
          %285 = sbr.rel (%p283) target = $region66
        $region65: #{sdl_forward.2} parent=15 // pred_region
          %s286 = sand.u32 %s16, 1
          %s287 = scalar_lea.sflag [#allocation7], %s286
          %s288 = sand.u32 %s127, 1
          %s289 = smul.addr %s288, 256
          %s290 = scalar_lea.vmem [#allocation8], %s289
          %s291 = smul.u32 64, %s24
          %s293 = ssub.s32 4096, 4096
          %294 = vsyncadd %s287, %s293
          %s295 = smul.addr %s291, 64
          %s296 = scalar_lea.hbm %s3, %s295
          %s297 = sshll.u32 %s290, 4
          %s298 = int_to_ptr.vmem [resolvable:$true] %s297
          %303 = dma.hbm_to_vmem [thread:$0]  %s296, 4096, %s298, %s287, 64, 64, 4
        $region66: #{sdl_forward.2} parent=15 // pred_fallthru
          _
      $region16: #{sdl_forward.2} parent=5 // pred_fallthru
        _
      %p304 = scmp.le.s32.totalorder 1, %s16
      %p305 = scmp.lt.s32.totalorder %s16, 25
      %p306 = pnand %p304, %p305
      %p307 = pneg %p306
      // Predicated region
      $region67: #{sdl_forward.2} parent=5 // pred_check
        _
      $region68: #{sdl_forward.2} parent=5 // pred_check_branch
        %309 = sbr.rel (%p306) target = $region70
      $region69: #{sdl_forward.2} parent=5 // pred_region
        %s310 = ssub.s32 %s16, 1
        %s311 = sand.u32 %s50, 1
        %s312 = sand.u32 %s50, 1
        %s313 = smul.addr %s312, 16
        %s314 = scalar_lea.vmem [#allocation3], %s313
        // Predicated region
        $region71: #{sdl_forward.2} parent=69 // pred_check
          %p315 = pneg %p63
        $region72: #{sdl_forward.2} parent=69 // pred_check_branch
          %317 = sbr.rel (%p315) target = $region74
        $region73: #{sdl_forward.2} parent=69 // pred_region
          _
        $region74: #{sdl_forward.2} parent=69 // pred_fallthru
          _
        %s318 = sand.u32 %s78, 1
        %s319 = scalar_lea.sflag [#allocation5], %s318
        %s320 = sand.u32 %s78, 1
        %s321 = smul.addr %s320, 512
        %s322 = scalar_lea.vmem [#allocation4], %s321
        // Predicated region
        $region75: #{sdl_forward.2} parent=69 // pred_check
          %p323 = pneg %p91
        $region76: #{sdl_forward.2} parent=69 // pred_check_branch
          %325 = sbr.rel (%p323) target = $region78
        $region77: #{sdl_forward.2} parent=69 // pred_region
          %326 = dma.done %s319, 8192
        $region78: #{sdl_forward.2} parent=69 // pred_fallthru
          _
        %s327 = sand.u32 %s21, 1
        %s328 = scalar_lea.sflag [#allocation7], %s327
        %s329 = sand.u32 %s104, 1
        %s330 = smul.addr %s329, 4
        %s331 = scalar_lea.vmem [#allocation6], %s330
        // Predicated region
        $region79: #{sdl_forward.2} parent=69 // pred_check
          %p332 = pneg %p117
        $region80: #{sdl_forward.2} parent=69 // pred_check_branch
          %334 = sbr.rel (%p332) target = $region82
        $region81: #{sdl_forward.2} parent=69 // pred_region
          %335 = dma.done %s328, 64
        $region82: #{sdl_forward.2} parent=69 // pred_fallthru
          _
        %s336 = sand.u32 %s21, 1
        %s337 = scalar_lea.sflag [#allocation7], %s336
        %s338 = sand.u32 %s130, 1
        %s339 = smul.addr %s338, 256
        %s340 = scalar_lea.vmem [#allocation8], %s339
        // Predicated region
        $region83: #{sdl_forward.2} parent=69 // pred_check
          %p341 = pneg %p143
        $region84: #{sdl_forward.2} parent=69 // pred_check_branch
          %343 = sbr.rel (%p341) target = $region86
        $region85: #{sdl_forward.2} parent=69 // pred_region
          %344 = dma.done %s337, 4096
        $region86: #{sdl_forward.2} parent=69 // pred_fallthru
          _
        %s345 = sand.u32 %s50, 1
        %s346 = sand.u32 %s50, 1
        %s347 = smul.addr %s346, 16
        %s348 = scalar_lea.vmem [#allocation3], %s347
        %p349 = pneg %p63
        %p350 = pneg %p60
        %s351 = sand.u32 %s78, 1
        %s352 = scalar_lea.sflag [#allocation5], %s351
        %s353 = sand.u32 %s78, 1
        %s354 = smul.addr %s353, 512
        %s355 = scalar_lea.vmem [#allocation4], %s354
        %p356 = pneg %p91
        %p357 = pneg %p88
        %s358 = sand.u32 %s21, 1
        %s359 = scalar_lea.sflag [#allocation7], %s358
        %s360 = sand.u32 %s104, 1
        %s361 = smul.addr %s360, 4
        %s362 = scalar_lea.vmem [#allocation6], %s361
        %p363 = pneg %p117
        %p364 = pneg %p114
        %s365 = sand.u32 %s21, 1
        %s366 = scalar_lea.sflag [#allocation7], %s365
        %s367 = sand.u32 %s130, 1
        %s368 = smul.addr %s367, 256
        %s369 = scalar_lea.vmem [#allocation8], %s368
        %p370 = pneg %p143
        %p371 = pneg %p140
        %p372 = pneg %p171
        %p373 = pneg %p168
        %p374 = scmp.lt.s32.totalorder %s27, 7
        %s375 = scalar_select %p374, %s27, 7
        %p376 = scmp.lt.s32.totalorder %s26, 0
        %s377 = scalar_select %p376, %s26, 0
        %s378 = sadd.s32 %s377, %s375
        %s379 = smul.addr %s378, 2
        %s380 = scalar_lea.vmem %s4, %s379
        %s381 = smul.u32 2, %s26
        %s382 = smul.u32 2, %s28
        %s383 = smul.u32 32, %s28
        %s384 = smul.u32 4, %s27
        %s385 = smul.u32 4, %s27
        %s386 = smul.u32 64, %s27
        %p387 = scmp.lt.s32.totalorder %s27, 7
        %s388 = scalar_select %p387, %s27, 7
        %p389 = scmp.lt.s32.totalorder %s26, 0
        %s390 = scalar_select %p389, %s26, 0
        %s391 = sadd.s32 %s390, %s388
        %s392 = smul.addr %s391, 2
        %s393 = scalar_lea.vmem %s4, %s392
        %p395 = scmp.eq.s32.totalorder %s28, 0
        // Predicated region
        $region87: #{sdl_forward.2} parent=69 // pred_check
          %p396 = pneg %p395
        $region88: #{sdl_forward.2} parent=69 // pred_check_branch
          %398 = sbr.rel (%p396) target = $region90
        $region89: #{sdl_forward.2} parent=69 // pred_region
          %399 = vst [vmem:[#allocation2] sm:$0xff] 0.0
          %400 = vst [vmem:[#allocation2 + $0x8] sm:$0xff] 0.0
          %401 = vst [vmem:[#allocation2 + $0x10] sm:$0xff] 0.0
          %402 = vst [vmem:[#allocation2 + $0x18] sm:$0xff] 0.0
          %403 = vst [vmem:[#allocation2 + $0x20] sm:$0xff] 0.0
          %404 = vst [vmem:[#allocation2 + $0x28] sm:$0xff] 0.0
          %405 = vst [vmem:[#allocation2 + $0x30] sm:$0xff] 0.0
          %406 = vst [vmem:[#allocation2 + $0x38] sm:$0xff] 0.0
        $region90: #{sdl_forward.2} parent=69 // pred_fallthru
          _
        %v407 = vld [vmem:[#allocation2] sm:$0xff]
        %v408 = vld [vmem:[#allocation2 + $0x8] sm:$0xff]
        %v409 = vld [vmem:[#allocation2 + $0x10] sm:$0xff]
        %v410 = vld [vmem:[#allocation2 + $0x18] sm:$0xff]
        %v411 = vld [vmem:[#allocation2 + $0x20] sm:$0xff]
        %v412 = vld [vmem:[#allocation2 + $0x28] sm:$0xff]
        %v413 = vld [vmem:[#allocation2 + $0x30] sm:$0xff]
        %v414 = vld [vmem:[#allocation2 + $0x38] sm:$0xff]
        %v415 = vld [vmem:[%s314] sm:$0xff]
        %v416 = vld [vmem:[%s314 + $0x8] sm:$0xff]
        %v417 = vld [vmem:[%s322] sm:$0xff]
        %v418 = vld [vmem:[%s322 + $0x8] sm:$0xff]
        %v419 = vld [vmem:[%s322 + $0x10] sm:$0xff]
        %v420 = vld [vmem:[%s322 + $0x18] sm:$0xff]
        %v421 = vld [vmem:[%s322 + $0x20] sm:$0xff]
        %v422 = vld [vmem:[%s322 + $0x28] sm:$0xff]
        %v423 = vld [vmem:[%s322 + $0x30] sm:$0xff]
        %v424 = vld [vmem:[%s322 + $0x38] sm:$0xff]
        %v425 = vld [vmem:[%s322 + $0x40] sm:$0xff]
        %v426 = vld [vmem:[%s322 + $0x48] sm:$0xff]
        %v427 = vld [vmem:[%s322 + $0x50] sm:$0xff]
        %v428 = vld [vmem:[%s322 + $0x58] sm:$0xff]
        %v429 = vld [vmem:[%s322 + $0x60] sm:$0xff]
        %v430 = vld [vmem:[%s322 + $0x68] sm:$0xff]
        %v431 = vld [vmem:[%s322 + $0x70] sm:$0xff]
        %v432 = vld [vmem:[%s322 + $0x78] sm:$0xff]
        %v433 = vld [vmem:[%s322 + $0x80] sm:$0xff]
        %v434 = vld [vmem:[%s322 + $0x88] sm:$0xff]
        %v435 = vld [vmem:[%s322 + $0x90] sm:$0xff]
        %v436 = vld [vmem:[%s322 + $0x98] sm:$0xff]
        %v437 = vld [vmem:[%s322 + $0xa0] sm:$0xff]
        %v438 = vld [vmem:[%s322 + $0xa8] sm:$0xff]
        %v439 = vld [vmem:[%s322 + $0xb0] sm:$0xff]
        %v440 = vld [vmem:[%s322 + $0xb8] sm:$0xff]
        %v441 = vld [vmem:[%s322 + $0xc0] sm:$0xff]
        %v442 = vld [vmem:[%s322 + $0xc8] sm:$0xff]
        %v443 = vld [vmem:[%s322 + $0xd0] sm:$0xff]
        %v444 = vld [vmem:[%s322 + $0xd8] sm:$0xff]
        %v445 = vld [vmem:[%s322 + $0xe0] sm:$0xff]
        %v446 = vld [vmem:[%s322 + $0xe8] sm:$0xff]
        %v447 = vld [vmem:[%s322 + $0xf0] sm:$0xff]
        %v448 = vld [vmem:[%s322 + $0xf8] sm:$0xff]
        %v449 = vld [vmem:[%s322 + $0x100] sm:$0xff]
        %v450 = vld [vmem:[%s322 + $0x108] sm:$0xff]
        %v451 = vld [vmem:[%s322 + $0x110] sm:$0xff]
        %v452 = vld [vmem:[%s322 + $0x118] sm:$0xff]
        %v453 = vld [vmem:[%s322 + $0x120] sm:$0xff]
        %v454 = vld [vmem:[%s322 + $0x128] sm:$0xff]
        %v455 = vld [vmem:[%s322 + $0x130] sm:$0xff]
        %v456 = vld [vmem:[%s322 + $0x138] sm:$0xff]
        %v457 = vld [vmem:[%s322 + $0x140] sm:$0xff]
        %v458 = vld [vmem:[%s322 + $0x148] sm:$0xff]
        %v459 = vld [vmem:[%s322 + $0x150] sm:$0xff]
        %v460 = vld [vmem:[%s322 + $0x158] sm:$0xff]
        %v461 = vld [vmem:[%s322 + $0x160] sm:$0xff]
        %v462 = vld [vmem:[%s322 + $0x168] sm:$0xff]
        %v463 = vld [vmem:[%s322 + $0x170] sm:$0xff]
        %v464 = vld [vmem:[%s322 + $0x178] sm:$0xff]
        %v465 = vld [vmem:[%s322 + $0x180] sm:$0xff]
        %v466 = vld [vmem:[%s322 + $0x188] sm:$0xff]
        %v467 = vld [vmem:[%s322 + $0x190] sm:$0xff]
        %v468 = vld [vmem:[%s322 + $0x198] sm:$0xff]
        %v469 = vld [vmem:[%s322 + $0x1a0] sm:$0xff]
        %v470 = vld [vmem:[%s322 + $0x1a8] sm:$0xff]
        %v471 = vld [vmem:[%s322 + $0x1b0] sm:$0xff]
        %v472 = vld [vmem:[%s322 + $0x1b8] sm:$0xff]
        %v473 = vld [vmem:[%s322 + $0x1c0] sm:$0xff]
        %v474 = vld [vmem:[%s322 + $0x1c8] sm:$0xff]
        %v475 = vld [vmem:[%s322 + $0x1d0] sm:$0xff]
        %v476 = vld [vmem:[%s322 + $0x1d8] sm:$0xff]
        %v477 = vld [vmem:[%s322 + $0x1e0] sm:$0xff]
        %v478 = vld [vmem:[%s322 + $0x1e8] sm:$0xff]
        %v479 = vld [vmem:[%s322 + $0x1f0] sm:$0xff]
        %v480 = vld [vmem:[%s322 + $0x1f8] sm:$0xff]
        %v483 = vunpack.c.l.b16 %v415
        %v484 = vunpack.c.h.b16 %v415
        %v485 = vunpack.c.l.b16 %v416
        %v486 = vunpack.c.h.b16 %v416
        %v487 = vpack.c.b16 %v485, %v483
        %v488 = vpack.c.b16 %v486, %v484
        %v555 = vunpack.c.l.b16 %v417
        %v556 = vunpack.c.h.b16 %v417
        %v557 = vunpack.c.l.b16 %v418
        %v558 = vunpack.c.h.b16 %v418
        %v559 = vunpack.c.l.b16 %v419
        %v560 = vunpack.c.h.b16 %v419
        %v561 = vunpack.c.l.b16 %v420
        %v562 = vunpack.c.h.b16 %v420
        %v563 = vunpack.c.l.b16 %v421
        %v564 = vunpack.c.h.b16 %v421
        %v565 = vunpack.c.l.b16 %v422
        %v566 = vunpack.c.h.b16 %v422
        %v567 = vunpack.c.l.b16 %v423
        %v568 = vunpack.c.h.b16 %v423
        %v569 = vunpack.c.l.b16 %v424
        %v570 = vunpack.c.h.b16 %v424
        %v571 = vunpack.c.l.b16 %v425
        %v572 = vunpack.c.h.b16 %v425
        %v573 = vunpack.c.l.b16 %v426
        %v574 = vunpack.c.h.b16 %v426
        %v575 = vunpack.c.l.b16 %v427
        %v576 = vunpack.c.h.b16 %v427
        %v577 = vunpack.c.l.b16 %v428
        %v578 = vunpack.c.h.b16 %v428
        %v579 = vunpack.c.l.b16 %v429
        %v580 = vunpack.c.h.b16 %v429
        %v581 = vunpack.c.l.b16 %v430
        %v582 = vunpack.c.h.b16 %v430
        %v583 = vunpack.c.l.b16 %v431
        %v584 = vunpack.c.h.b16 %v431
        %v585 = vunpack.c.l.b16 %v432
        %v586 = vunpack.c.h.b16 %v432
        %v587 = vunpack.c.l.b16 %v433
        %v588 = vunpack.c.h.b16 %v433
        %v589 = vunpack.c.l.b16 %v434
        %v590 = vunpack.c.h.b16 %v434
        %v591 = vunpack.c.l.b16 %v435
        %v592 = vunpack.c.h.b16 %v435
        %v593 = vunpack.c.l.b16 %v436
        %v594 = vunpack.c.h.b16 %v436
        %v595 = vunpack.c.l.b16 %v437
        %v596 = vunpack.c.h.b16 %v437
        %v597 = vunpack.c.l.b16 %v438
        %v598 = vunpack.c.h.b16 %v438
        %v599 = vunpack.c.l.b16 %v439
        %v600 = vunpack.c.h.b16 %v439
        %v601 = vunpack.c.l.b16 %v440
        %v602 = vunpack.c.h.b16 %v440
        %v603 = vunpack.c.l.b16 %v441
        %v604 = vunpack.c.h.b16 %v441
        %v605 = vunpack.c.l.b16 %v442
        %v606 = vunpack.c.h.b16 %v442
        %v607 = vunpack.c.l.b16 %v443
        %v608 = vunpack.c.h.b16 %v443
        %v609 = vunpack.c.l.b16 %v444
        %v610 = vunpack.c.h.b16 %v444
        %v611 = vunpack.c.l.b16 %v445
        %v612 = vunpack.c.h.b16 %v445
        %v613 = vunpack.c.l.b16 %v446
        %v614 = vunpack.c.h.b16 %v446
        %v615 = vunpack.c.l.b16 %v447
        %v616 = vunpack.c.h.b16 %v447
        %v617 = vunpack.c.l.b16 %v448
        %v618 = vunpack.c.h.b16 %v448
        %v619 = vunpack.c.l.b16 %v449
        %v620 = vunpack.c.h.b16 %v449
        %v621 = vunpack.c.l.b16 %v450
        %v622 = vunpack.c.h.b16 %v450
        %v623 = vunpack.c.l.b16 %v451
        %v624 = vunpack.c.h.b16 %v451
        %v625 = vunpack.c.l.b16 %v452
        %v626 = vunpack.c.h.b16 %v452
        %v627 = vunpack.c.l.b16 %v453
        %v628 = vunpack.c.h.b16 %v453
        %v629 = vunpack.c.l.b16 %v454
        %v630 = vunpack.c.h.b16 %v454
        %v631 = vunpack.c.l.b16 %v455
        %v632 = vunpack.c.h.b16 %v455
        %v633 = vunpack.c.l.b16 %v456
        %v634 = vunpack.c.h.b16 %v456
        %v635 = vunpack.c.l.b16 %v457
        %v636 = vunpack.c.h.b16 %v457
        %v637 = vunpack.c.l.b16 %v458
        %v638 = vunpack.c.h.b16 %v458
        %v639 = vunpack.c.l.b16 %v459
        %v640 = vunpack.c.h.b16 %v459
        %v641 = vunpack.c.l.b16 %v460
        %v642 = vunpack.c.h.b16 %v460
        %v643 = vunpack.c.l.b16 %v461
        %v644 = vunpack.c.h.b16 %v461
        %v645 = vunpack.c.l.b16 %v462
        %v646 = vunpack.c.h.b16 %v462
        %v647 = vunpack.c.l.b16 %v463
        %v648 = vunpack.c.h.b16 %v463
        %v649 = vunpack.c.l.b16 %v464
        %v650 = vunpack.c.h.b16 %v464
        %v651 = vunpack.c.l.b16 %v465
        %v652 = vunpack.c.h.b16 %v465
        %v653 = vunpack.c.l.b16 %v466
        %v654 = vunpack.c.h.b16 %v466
        %v655 = vunpack.c.l.b16 %v467
        %v656 = vunpack.c.h.b16 %v467
        %v657 = vunpack.c.l.b16 %v468
        %v658 = vunpack.c.h.b16 %v468
        %v659 = vunpack.c.l.b16 %v469
        %v660 = vunpack.c.h.b16 %v469
        %v661 = vunpack.c.l.b16 %v470
        %v662 = vunpack.c.h.b16 %v470
        %v663 = vunpack.c.l.b16 %v471
        %v664 = vunpack.c.h.b16 %v471
        %v665 = vunpack.c.l.b16 %v472
        %v666 = vunpack.c.h.b16 %v472
        %v667 = vunpack.c.l.b16 %v473
        %v668 = vunpack.c.h.b16 %v473
        %v669 = vunpack.c.l.b16 %v474
        %v670 = vunpack.c.h.b16 %v474
        %v671 = vunpack.c.l.b16 %v475
        %v672 = vunpack.c.h.b16 %v475
        %v673 = vunpack.c.l.b16 %v476
        %v674 = vunpack.c.h.b16 %v476
        %v675 = vunpack.c.l.b16 %v477
        %v676 = vunpack.c.h.b16 %v477
        %v677 = vunpack.c.l.b16 %v478
        %v678 = vunpack.c.h.b16 %v478
        %v679 = vunpack.c.l.b16 %v479
        %v680 = vunpack.c.h.b16 %v479
        %v681 = vunpack.c.l.b16 %v480
        %v682 = vunpack.c.h.b16 %v480
        %v683 = vpack.c.b16 %v559, %v555
        %v684 = vpack.c.b16 %v560, %v556
        %v685 = vpack.c.b16 %v561, %v557
        %v686 = vpack.c.b16 %v562, %v558
        %v687 = vpack.c.b16 %v567, %v563
        %v688 = vpack.c.b16 %v568, %v564
        %v689 = vpack.c.b16 %v569, %v565
        %v690 = vpack.c.b16 %v570, %v566
        %v691 = vpack.c.b16 %v575, %v571
        %v692 = vpack.c.b16 %v576, %v572
        %v693 = vpack.c.b16 %v577, %v573
        %v694 = vpack.c.b16 %v578, %v574
        %v695 = vpack.c.b16 %v583, %v579
        %v696 = vpack.c.b16 %v584, %v580
        %v697 = vpack.c.b16 %v585, %v581
        %v698 = vpack.c.b16 %v586, %v582
        %v699 = vpack.c.b16 %v591, %v587
        %v700 = vpack.c.b16 %v592, %v588
        %v701 = vpack.c.b16 %v593, %v589
        %v702 = vpack.c.b16 %v594, %v590
        %v703 = vpack.c.b16 %v599, %v595
        %v704 = vpack.c.b16 %v600, %v596
        %v705 = vpack.c.b16 %v601, %v597
        %v706 = vpack.c.b16 %v602, %v598
        %v707 = vpack.c.b16 %v607, %v603
        %v708 = vpack.c.b16 %v608, %v604
        %v709 = vpack.c.b16 %v609, %v605
        %v710 = vpack.c.b16 %v610, %v606
        %v711 = vpack.c.b16 %v615, %v611
        %v712 = vpack.c.b16 %v616, %v612
        %v713 = vpack.c.b16 %v617, %v613
        %v714 = vpack.c.b16 %v618, %v614
        %v715 = vpack.c.b16 %v623, %v619
        %v716 = vpack.c.b16 %v624, %v620
        %v717 = vpack.c.b16 %v625, %v621
        %v718 = vpack.c.b16 %v626, %v622
        %v719 = vpack.c.b16 %v631, %v627
        %v720 = vpack.c.b16 %v632, %v628
        %v721 = vpack.c.b16 %v633, %v629
        %v722 = vpack.c.b16 %v634, %v630
        %v723 = vpack.c.b16 %v639, %v635
        %v724 = vpack.c.b16 %v640, %v636
        %v725 = vpack.c.b16 %v641, %v637
        %v726 = vpack.c.b16 %v642, %v638
        %v727 = vpack.c.b16 %v647, %v643
        %v728 = vpack.c.b16 %v648, %v644
        %v729 = vpack.c.b16 %v649, %v645
        %v730 = vpack.c.b16 %v650, %v646
        %v731 = vpack.c.b16 %v655, %v651
        %v732 = vpack.c.b16 %v656, %v652
        %v733 = vpack.c.b16 %v657, %v653
        %v734 = vpack.c.b16 %v658, %v654
        %v735 = vpack.c.b16 %v663, %v659
        %v736 = vpack.c.b16 %v664, %v660
        %v737 = vpack.c.b16 %v665, %v661
        %v738 = vpack.c.b16 %v666, %v662
        %v739 = vpack.c.b16 %v671, %v667
        %v740 = vpack.c.b16 %v672, %v668
        %v741 = vpack.c.b16 %v673, %v669
        %v742 = vpack.c.b16 %v674, %v670
        %v743 = vpack.c.b16 %v679, %v675
        %v744 = vpack.c.b16 %v680, %v676
        %v745 = vpack.c.b16 %v681, %v677
        %v746 = vpack.c.b16 %v682, %v678
        %811 = vmatprep.subr.bf16.mxu0 %v712
        %812 = vmatpush1.bf16.msra.mxu0 %v711
        %813 = vmatprep.subr.bf16.mxu0 %v708
        %814 = vmatpush1.bf16.msra.mxu0 %v707
        %815 = vmatprep.subr.bf16.mxu0 %v704
        %816 = vmatpush1.bf16.msra.mxu0 %v703
        %817 = vmatprep.subr.bf16.mxu0 %v700
        %818 = vmatpush1.bf16.msra.mxu0 %v699
        %819 = vmatprep.subr.bf16.mxu0 %v696
        %820 = vmatpush1.bf16.msra.mxu0 %v695
        %821 = vmatprep.subr.bf16.mxu0 %v692
        %822 = vmatpush1.bf16.msra.mxu0 %v691
        %823 = vmatprep.subr.bf16.mxu0 %v688
        %824 = vmatpush1.bf16.msra.mxu0 %v687
        %825 = vmatprep.subr.bf16.mxu0 %v684
        %826 = vmatpush1.bf16.msra.mxu0 %v683
        %827 = vmatprep.subr.bf16.mxu0 %v744
        %828 = vmatpush2.bf16.msra.mxu0 %v743
        %829 = vmatprep.subr.bf16.mxu0 %v740
        %830 = vmatpush2.bf16.msra.mxu0 %v739
        %831 = vmatprep.subr.bf16.mxu0 %v736
        %832 = vmatpush2.bf16.msra.mxu0 %v735
        %833 = vmatprep.subr.bf16.mxu0 %v732
        %834 = vmatpush2.bf16.msra.mxu0 %v731
        %835 = vmatprep.subr.bf16.mxu0 %v728
        %836 = vmatpush2.bf16.msra.mxu0 %v727
        %837 = vmatprep.subr.bf16.mxu0 %v724
        %838 = vmatpush2.bf16.msra.mxu0 %v723
        %839 = vmatprep.subr.bf16.mxu0 %v720
        %840 = vmatpush2.bf16.msra.mxu0 %v719
        %841 = vmatprep.subr.bf16.mxu0 %v716
        %842 = vmatpush2.bf16.msra.mxu0 %v715
        %843 = vmatprep.mubr.bf16.mxu0 %v488
        %844 = vmatmul.mubr.bf16.gmra.mxu0 %v487
        %v845 = vpop.f32.mrf.mxu0
        %v846 = vadd.f32 0.0, %v845
        %v847 = vpop.f32.mrf.mxu0
        %v848 = vadd.f32 0.0, %v847
        %v849 = vpop.f32.mrf.mxu0
        %v850 = vadd.f32 0.0, %v849
        %v851 = vpop.f32.mrf.mxu0
        %v852 = vadd.f32 0.0, %v851
        %853 = vdwg.mxu0
        %854 = vmatprep.subr.bf16.mxu0 %v714
        %855 = vmatpush1.bf16.msra.mxu0 %v713
        %856 = vmatprep.subr.bf16.mxu0 %v710
        %857 = vmatpush1.bf16.msra.mxu0 %v709
        %858 = vmatprep.subr.bf16.mxu0 %v706
        %859 = vmatpush1.bf16.msra.mxu0 %v705
        %860 = vmatprep.subr.bf16.mxu0 %v702
        %861 = vmatpush1.bf16.msra.mxu0 %v701
        %862 = vmatprep.subr.bf16.mxu0 %v698
        %863 = vmatpush1.bf16.msra.mxu0 %v697
        %864 = vmatprep.subr.bf16.mxu0 %v694
        %865 = vmatpush1.bf16.msra.mxu0 %v693
        %866 = vmatprep.subr.bf16.mxu0 %v690
        %867 = vmatpush1.bf16.msra.mxu0 %v689
        %868 = vmatprep.subr.bf16.mxu0 %v686
        %869 = vmatpush1.bf16.msra.mxu0 %v685
        %870 = vmatprep.subr.bf16.mxu0 %v746
        %871 = vmatpush2.bf16.msra.mxu0 %v745
        %872 = vmatprep.subr.bf16.mxu0 %v742
        %873 = vmatpush2.bf16.msra.mxu0 %v741
        %874 = vmatprep.subr.bf16.mxu0 %v738
        %875 = vmatpush2.bf16.msra.mxu0 %v737
        %876 = vmatprep.subr.bf16.mxu0 %v734
        %877 = vmatpush2.bf16.msra.mxu0 %v733
        %878 = vmatprep.subr.bf16.mxu0 %v730
        %879 = vmatpush2.bf16.msra.mxu0 %v729
        %880 = vmatprep.subr.bf16.mxu0 %v726
        %881 = vmatpush2.bf16.msra.mxu0 %v725
        %882 = vmatprep.subr.bf16.mxu0 %v722
        %883 = vmatpush2.bf16.msra.mxu0 %v721
        %884 = vmatprep.subr.bf16.mxu0 %v718
        %885 = vmatpush2.bf16.msra.mxu0 %v717
        %886 = vmatprep.mubr.bf16.mxu0 %v488
        %887 = vmatmul.mubr.bf16.gmra.mxu0 %v487
        %v888 = vpop.f32.mrf.mxu0
        %v889 = vadd.f32 0.0, %v888
        %v890 = vpop.f32.mrf.mxu0
        %v891 = vadd.f32 0.0, %v890
        %v892 = vpop.f32.mrf.mxu0
        %v893 = vadd.f32 0.0, %v892
        %v894 = vpop.f32.mrf.mxu0
        %v895 = vadd.f32 0.0, %v894
        %896 = vdwg.mxu0
        %v897 = vadd.f32 %v407, %v846
        %v898 = vadd.f32 %v408, %v848
        %v899 = vadd.f32 %v409, %v889
        %v900 = vadd.f32 %v410, %v891
        %v901 = vadd.f32 %v411, %v850
        %v902 = vadd.f32 %v412, %v852
        %v903 = vadd.f32 %v413, %v893
        %v904 = vadd.f32 %v414, %v895
        %905 = vst [vmem:[#allocation2] sm:$0xff] %v897
        %906 = vst [vmem:[#allocation2 + $0x8] sm:$0xff] %v898
        %907 = vst [vmem:[#allocation2 + $0x10] sm:$0xff] %v899
        %908 = vst [vmem:[#allocation2 + $0x18] sm:$0xff] %v900
        %909 = vst [vmem:[#allocation2 + $0x20] sm:$0xff] %v901
        %910 = vst [vmem:[#allocation2 + $0x28] sm:$0xff] %v902
        %911 = vst [vmem:[#allocation2 + $0x30] sm:$0xff] %v903
        %912 = vst [vmem:[#allocation2 + $0x38] sm:$0xff] %v904
        %p913 = scmp.eq.s32.totalorder %s28, 2
        // Predicated region
        $region91: #{sdl_forward.2} parent=69 // pred_check
          %p914 = pneg %p913
        $region92: #{sdl_forward.2} parent=69 // pred_check_branch
          %916 = sbr.rel (%p914) target = $region94
        $region93: #{sdl_forward.2} parent=69 // pred_region
          %v917 = vld [vmem:[#allocation2] sm:$0xff]
          %v918 = vld [vmem:[#allocation2 + $0x8] sm:$0xff]
          %v919 = vld [vmem:[#allocation2 + $0x10] sm:$0xff]
          %v920 = vld [vmem:[#allocation2 + $0x18] sm:$0xff]
          %v921 = vld [vmem:[#allocation2 + $0x20] sm:$0xff]
          %v922 = vld [vmem:[#allocation2 + $0x28] sm:$0xff]
          %v923 = vld [vmem:[#allocation2 + $0x30] sm:$0xff]
          %v924 = vld [vmem:[#allocation2 + $0x38] sm:$0xff]
          %v925 = vld [vmem:[%s331] sm:$0xf]
          %v927 = vlaneseq
          %v928 = vshrl.u32 %v927, 7
          %v929 = vsub.s32 0, %v928
          %v930 = vrot.slane %v925, %v929
          %v931 = vlaneseq
          %v932 = vshrl.u32 %v931, 7
          %v933 = vsub.s32 1, %v932
          %v934 = vrot.slane %v925, %v933
          %v935 = vlaneseq
          %v936 = vshrl.u32 %v935, 7
          %v937 = vsub.s32 2, %v936
          %v938 = vrot.slane %v925, %v937
          %v939 = vlaneseq
          %v940 = vshrl.u32 %v939, 7
          %v941 = vsub.s32 3, %v940
          %v942 = vrot.slane %v925, %v941
          %v947 = vadd.f32 %v917, %v930
          %v948 = vadd.f32 %v918, %v934
          %v949 = vadd.f32 %v919, %v938
          %v950 = vadd.f32 %v920, %v942
          %v951 = vadd.f32 %v921, %v930
          %v952 = vadd.f32 %v922, %v934
          %v953 = vadd.f32 %v923, %v938
          %v954 = vadd.f32 %v924, %v942
          %v955 = vrot.slane %v947, 4
          %v956 = vadd.f32 %v947, %v955
          %v957 = vrot.slane %v956, 2
          %v958 = vadd.f32 %v956, %v957
          %v959 = vrot.slane %v958, 1
          %v960 = vadd.f32 %v958, %v959
          %v961 = vrot.slane %v948, 4
          %v962 = vadd.f32 %v948, %v961
          %v963 = vrot.slane %v962, 2
          %v964 = vadd.f32 %v962, %v963
          %v965 = vrot.slane %v964, 1
          %v966 = vadd.f32 %v964, %v965
          %v967 = vrot.slane %v949, 4
          %v968 = vadd.f32 %v949, %v967
          %v969 = vrot.slane %v968, 2
          %v970 = vadd.f32 %v968, %v969
          %v971 = vrot.slane %v970, 1
          %v972 = vadd.f32 %v970, %v971
          %v973 = vrot.slane %v950, 4
          %v974 = vadd.f32 %v950, %v973
          %v975 = vrot.slane %v974, 2
          %v976 = vadd.f32 %v974, %v975
          %v977 = vrot.slane %v976, 1
          %v978 = vadd.f32 %v976, %v977
          %v979 = vrot.slane %v951, 4
          %v980 = vadd.f32 %v951, %v979
          %v981 = vrot.slane %v980, 2
          %v982 = vadd.f32 %v980, %v981
          %v983 = vrot.slane %v982, 1
          %v984 = vadd.f32 %v982, %v983
          %v985 = vrot.slane %v952, 4
          %v986 = vadd.f32 %v952, %v985
          %v987 = vrot.slane %v986, 2
          %v988 = vadd.f32 %v986, %v987
          %v989 = vrot.slane %v988, 1
          %v990 = vadd.f32 %v988, %v989
          %v991 = vrot.slane %v953, 4
          %v992 = vadd.f32 %v953, %v991
          %v993 = vrot.slane %v992, 2
          %v994 = vadd.f32 %v992, %v993
          %v995 = vrot.slane %v994, 1
          %v996 = vadd.f32 %v994, %v995
          %v997 = vrot.slane %v954, 4
          %v998 = vadd.f32 %v954, %v997
          %v999 = vrot.slane %v998, 2
          %v1000 = vadd.f32 %v998, %v999
          %v1001 = vrot.slane %v1000, 1
          %v1002 = vadd.f32 %v1000, %v1001
          %v1003 = vrcp.pop 8.0
          %v1004 = vmul.f32 %v960, %v1003
          %v1005 = vmul.f32 %v966, %v1003
          %v1006 = vmul.f32 %v972, %v1003
          %v1007 = vmul.f32 %v978, %v1003
          %v1008 = vmul.f32 %v984, %v1003
          %v1009 = vmul.f32 %v990, %v1003
          %v1010 = vmul.f32 %v996, %v1003
          %v1011 = vmul.f32 %v1002, %v1003
          %v1012 = vpack.c.bf16 %v1004, %v1004
          %v1013 = vpack.c.bf16 %v1005, %v1005
          %v1014 = vpack.c.bf16 %v1006, %v1006
          %v1015 = vpack.c.bf16 %v1007, %v1007
          %v1016 = vpack.c.bf16 %v1008, %v1008
          %v1017 = vpack.c.bf16 %v1009, %v1009
          %v1018 = vpack.c.bf16 %v1010, %v1010
          %v1019 = vpack.c.bf16 %v1011, %v1011
          %v1020 = vld [vmem:[%s340] sm:$0xf]
          %v1021 = vld [vmem:[%s340 + $0x4] sm:$0xf]
          %v1022 = vld [vmem:[%s340 + $0x8] sm:$0xf]
          %v1023 = vld [vmem:[%s340 + $0xc] sm:$0xf]
          %v1024 = vld [vmem:[%s340 + $0x10] sm:$0xf]
          %v1025 = vld [vmem:[%s340 + $0x14] sm:$0xf]
          %v1026 = vld [vmem:[%s340 + $0x18] sm:$0xf]
          %v1027 = vld [vmem:[%s340 + $0x1c] sm:$0xf]
          %v1028 = vld [vmem:[%s340 + $0x20] sm:$0xf]
          %v1029 = vld [vmem:[%s340 + $0x24] sm:$0xf]
          %v1030 = vld [vmem:[%s340 + $0x28] sm:$0xf]
          %v1031 = vld [vmem:[%s340 + $0x2c] sm:$0xf]
          %v1032 = vld [vmem:[%s340 + $0x30] sm:$0xf]
          %v1033 = vld [vmem:[%s340 + $0x34] sm:$0xf]
          %v1034 = vld [vmem:[%s340 + $0x38] sm:$0xf]
          %v1035 = vld [vmem:[%s340 + $0x3c] sm:$0xf]
          %v1036 = vld [vmem:[%s340 + $0x40] sm:$0xf]
          %v1037 = vld [vmem:[%s340 + $0x44] sm:$0xf]
          %v1038 = vld [vmem:[%s340 + $0x48] sm:$0xf]
          %v1039 = vld [vmem:[%s340 + $0x4c] sm:$0xf]
          %v1040 = vld [vmem:[%s340 + $0x50] sm:$0xf]
          %v1041 = vld [vmem:[%s340 + $0x54] sm:$0xf]
          %v1042 = vld [vmem:[%s340 + $0x58] sm:$0xf]
          %v1043 = vld [vmem:[%s340 + $0x5c] sm:$0xf]
          %v1044 = vld [vmem:[%s340 + $0x60] sm:$0xf]
          %v1045 = vld [vmem:[%s340 + $0x64] sm:$0xf]
          %v1046 = vld [vmem:[%s340 + $0x68] sm:$0xf]
          %v1047 = vld [vmem:[%s340 + $0x6c] sm:$0xf]
          %v1048 = vld [vmem:[%s340 + $0x70] sm:$0xf]
          %v1049 = vld [vmem:[%s340 + $0x74] sm:$0xf]
          %v1050 = vld [vmem:[%s340 + $0x78] sm:$0xf]
          %v1051 = vld [vmem:[%s340 + $0x7c] sm:$0xf]
          %v1052 = vld [vmem:[%s340 + $0x80] sm:$0xf]
          %v1053 = vld [vmem:[%s340 + $0x84] sm:$0xf]
          %v1054 = vld [vmem:[%s340 + $0x88] sm:$0xf]
          %v1055 = vld [vmem:[%s340 + $0x8c] sm:$0xf]
          %v1056 = vld [vmem:[%s340 + $0x90] sm:$0xf]
          %v1057 = vld [vmem:[%s340 + $0x94] sm:$0xf]
          %v1058 = vld [vmem:[%s340 + $0x98] sm:$0xf]
          %v1059 = vld [vmem:[%s340 + $0x9c] sm:$0xf]
          %v1060 = vld [vmem:[%s340 + $0xa0] sm:$0xf]
          %v1061 = vld [vmem:[%s340 + $0xa4] sm:$0xf]
          %v1062 = vld [vmem:[%s340 + $0xa8] sm:$0xf]
          %v1063 = vld [vmem:[%s340 + $0xac] sm:$0xf]
          %v1064 = vld [vmem:[%s340 + $0xb0] sm:$0xf]
          %v1065 = vld [vmem:[%s340 + $0xb4] sm:$0xf]
          %v1066 = vld [vmem:[%s340 + $0xb8] sm:$0xf]
          %v1067 = vld [vmem:[%s340 + $0xbc] sm:$0xf]
          %v1068 = vld [vmem:[%s340 + $0xc0] sm:$0xf]
          %v1069 = vld [vmem:[%s340 + $0xc4] sm:$0xf]
          %v1070 = vld [vmem:[%s340 + $0xc8] sm:$0xf]
          %v1071 = vld [vmem:[%s340 + $0xcc] sm:$0xf]
          %v1072 = vld [vmem:[%s340 + $0xd0] sm:$0xf]
          %v1073 = vld [vmem:[%s340 + $0xd4] sm:$0xf]
          %v1074 = vld [vmem:[%s340 + $0xd8] sm:$0xf]
          %v1075 = vld [vmem:[%s340 + $0xdc] sm:$0xf]
          %v1076 = vld [vmem:[%s340 + $0xe0] sm:$0xf]
          %v1077 = vld [vmem:[%s340 + $0xe4] sm:$0xf]
          %v1078 = vld [vmem:[%s340 + $0xe8] sm:$0xf]
          %v1079 = vld [vmem:[%s340 + $0xec] sm:$0xf]
          %v1080 = vld [vmem:[%s340 + $0xf0] sm:$0xf]
          %v1081 = vld [vmem:[%s340 + $0xf4] sm:$0xf]
          %v1082 = vld [vmem:[%s340 + $0xf8] sm:$0xf]
          %v1083 = vld [vmem:[%s340 + $0xfc] sm:$0xf]
          %v1092 = vunpack.c.l.b16 %v1012
          %v1093 = vunpack.c.l.b16 %v1013
          %v1094 = vunpack.c.l.b16 %v1014
          %v1095 = vunpack.c.l.b16 %v1015
          %v1096 = vunpack.c.l.b16 %v1016
          %v1097 = vunpack.c.l.b16 %v1017
          %v1098 = vunpack.c.l.b16 %v1018
          %v1099 = vunpack.c.l.b16 %v1019
          %vm1100 = vcmask 1041409
          %v1101 = vsel %vm1100, %v1096, %v1092
          %v1102 = vsel %vm1100, %v1097, %v1093
          %v1103 = vsel %vm1100, %v1098, %v1094
          %v1104 = vsel %vm1100, %v1099, %v1095
          %v1105 = vpack.c.b16 %v1101, %v1101
          %v1106 = vpack.c.b16 %v1102, %v1102
          %v1107 = vpack.c.b16 %v1103, %v1103
          %v1108 = vpack.c.b16 %v1104, %v1104
          %v1177 = vunpack.c.l.b16 %v1020
          %v1178 = vunpack.c.l.b16 %v1021
          %v1179 = vunpack.c.l.b16 %v1022
          %v1180 = vunpack.c.l.b16 %v1023
          %v1181 = vunpack.c.l.b16 %v1024
          %v1182 = vunpack.c.l.b16 %v1025
          %v1183 = vunpack.c.l.b16 %v1026
          %v1184 = vunpack.c.l.b16 %v1027
          %v1185 = vunpack.c.l.b16 %v1028
          %v1186 = vunpack.c.l.b16 %v1029
          %v1187 = vunpack.c.l.b16 %v1030
          %v1188 = vunpack.c.l.b16 %v1031
          %v1189 = vunpack.c.l.b16 %v1032
          %v1190 = vunpack.c.l.b16 %v1033
          %v1191 = vunpack.c.l.b16 %v1034
          %v1192 = vunpack.c.l.b16 %v1035
          %v1193 = vunpack.c.l.b16 %v1036
          %v1194 = vunpack.c.l.b16 %v1037
          %v1195 = vunpack.c.l.b16 %v1038
          %v1196 = vunpack.c.l.b16 %v1039
          %v1197 = vunpack.c.l.b16 %v1040
          %v1198 = vunpack.c.l.b16 %v1041
          %v1199 = vunpack.c.l.b16 %v1042
          %v1200 = vunpack.c.l.b16 %v1043
          %v1201 = vunpack.c.l.b16 %v1044
          %v1202 = vunpack.c.l.b16 %v1045
          %v1203 = vunpack.c.l.b16 %v1046
          %v1204 = vunpack.c.l.b16 %v1047
          %v1205 = vunpack.c.l.b16 %v1048
          %v1206 = vunpack.c.l.b16 %v1049
          %v1207 = vunpack.c.l.b16 %v1050
          %v1208 = vunpack.c.l.b16 %v1051
          %v1209 = vunpack.c.l.b16 %v1052
          %v1210 = vunpack.c.l.b16 %v1053
          %v1211 = vunpack.c.l.b16 %v1054
          %v1212 = vunpack.c.l.b16 %v1055
          %v1213 = vunpack.c.l.b16 %v1056
          %v1214 = vunpack.c.l.b16 %v1057
          %v1215 = vunpack.c.l.b16 %v1058
          %v1216 = vunpack.c.l.b16 %v1059
          %v1217 = vunpack.c.l.b16 %v1060
          %v1218 = vunpack.c.l.b16 %v1061
          %v1219 = vunpack.c.l.b16 %v1062
          %v1220 = vunpack.c.l.b16 %v1063
          %v1221 = vunpack.c.l.b16 %v1064
          %v1222 = vunpack.c.l.b16 %v1065
          %v1223 = vunpack.c.l.b16 %v1066
          %v1224 = vunpack.c.l.b16 %v1067
          %v1225 = vunpack.c.l.b16 %v1068
          %v1226 = vunpack.c.l.b16 %v1069
          %v1227 = vunpack.c.l.b16 %v1070
          %v1228 = vunpack.c.l.b16 %v1071
          %v1229 = vunpack.c.l.b16 %v1072
          %v1230 = vunpack.c.l.b16 %v1073
          %v1231 = vunpack.c.l.b16 %v1074
          %v1232 = vunpack.c.l.b16 %v1075
          %v1233 = vunpack.c.l.b16 %v1076
          %v1234 = vunpack.c.l.b16 %v1077
          %v1235 = vunpack.c.l.b16 %v1078
          %v1236 = vunpack.c.l.b16 %v1079
          %v1237 = vunpack.c.l.b16 %v1080
          %v1238 = vunpack.c.l.b16 %v1081
          %v1239 = vunpack.c.l.b16 %v1082
          %v1240 = vunpack.c.l.b16 %v1083
          %v1241 = vpack.c.b16 %v1178, %v1177
          %v1242 = vpack.c.b16 %v1180, %v1179
          %v1243 = vpack.c.b16 %v1182, %v1181
          %v1244 = vpack.c.b16 %v1184, %v1183
          %v1245 = vpack.c.b16 %v1186, %v1185
          %v1246 = vpack.c.b16 %v1188, %v1187
          %v1247 = vpack.c.b16 %v1190, %v1189
          %v1248 = vpack.c.b16 %v1192, %v1191
          %v1249 = vpack.c.b16 %v1194, %v1193
          %v1250 = vpack.c.b16 %v1196, %v1195
          %v1251 = vpack.c.b16 %v1198, %v1197
          %v1252 = vpack.c.b16 %v1200, %v1199
          %v1253 = vpack.c.b16 %v1202, %v1201
          %v1254 = vpack.c.b16 %v1204, %v1203
          %v1255 = vpack.c.b16 %v1206, %v1205
          %v1256 = vpack.c.b16 %v1208, %v1207
          %v1257 = vpack.c.b16 %v1210, %v1209
          %v1258 = vpack.c.b16 %v1212, %v1211
          %v1259 = vpack.c.b16 %v1214, %v1213
          %v1260 = vpack.c.b16 %v1216, %v1215
          %v1261 = vpack.c.b16 %v1218, %v1217
          %v1262 = vpack.c.b16 %v1220, %v1219
          %v1263 = vpack.c.b16 %v1222, %v1221
          %v1264 = vpack.c.b16 %v1224, %v1223
          %v1265 = vpack.c.b16 %v1226, %v1225
          %v1266 = vpack.c.b16 %v1228, %v1227
          %v1267 = vpack.c.b16 %v1230, %v1229
          %v1268 = vpack.c.b16 %v1232, %v1231
          %v1269 = vpack.c.b16 %v1234, %v1233
          %v1270 = vpack.c.b16 %v1236, %v1235
          %v1271 = vpack.c.b16 %v1238, %v1237
          %v1272 = vpack.c.b16 %v1240, %v1239
          %1305 = vmatprep.subr.bf16.mxu0 0
          %1306 = vmatpush1.bf16.msra.mxu0 %v1248
          %1307 = vmatprep.subr.bf16.mxu0 0
          %1308 = vmatpush1.bf16.msra.mxu0 %v1247
          %1309 = vmatprep.subr.bf16.mxu0 0
          %1310 = vmatpush1.bf16.msra.mxu0 %v1246
          %1311 = vmatprep.subr.bf16.mxu0 0
          %1312 = vmatpush1.bf16.msra.mxu0 %v1245
          %1313 = vmatprep.subr.bf16.mxu0 0
          %1314 = vmatpush1.bf16.msra.mxu0 %v1244
          %1315 = vmatprep.subr.bf16.mxu0 0
          %1316 = vmatpush1.bf16.msra.mxu0 %v1243
          %1317 = vmatprep.subr.bf16.mxu0 0
          %1318 = vmatpush1.bf16.msra.mxu0 %v1242
          %1319 = vmatprep.subr.bf16.mxu0 0
          %1320 = vmatpush1.bf16.msra.mxu0 %v1241
          %1321 = vmatprep.subr.bf16.mxu0 0
          %1322 = vmatpush2.bf16.msra.mxu0 %v1256
          %1323 = vmatprep.subr.bf16.mxu0 0
          %1324 = vmatpush2.bf16.msra.mxu0 %v1255
          %1325 = vmatprep.subr.bf16.mxu0 0
          %1326 = vmatpush2.bf16.msra.mxu0 %v1254
          %1327 = vmatprep.subr.bf16.mxu0 0
          %1328 = vmatpush2.bf16.msra.mxu0 %v1253
          %1329 = vmatprep.subr.bf16.mxu0 0
          %1330 = vmatpush2.bf16.msra.mxu0 %v1252
          %1331 = vmatprep.subr.bf16.mxu0 0
          %1332 = vmatpush2.bf16.msra.mxu0 %v1251
          %1333 = vmatprep.subr.bf16.mxu0 0
          %1334 = vmatpush2.bf16.msra.mxu0 %v1250
          %1335 = vmatprep.subr.bf16.mxu0 0
          %1336 = vmatpush2.bf16.msra.mxu0 %v1249
          %1337 = vmatprep.mubr.bf16.mxu0 %v1106
          %1338 = vmatmul.mubr.bf16.gmra.mxu0 %v1105
          %v1339 = vpop.f32.mrf.mxu0
          %v1340 = vadd.f32 0.0, %v1339
          %v1341 = vpop.f32.mrf.mxu0
          %v1342 = vpop.f32.mrf.mxu0
          %v1343 = vpop.f32.mrf.mxu0
          %1344 = vdwg.mxu0
          %1345 = vmatprep.subr.bf16.mxu0 0
          %1346 = vmatpush1.bf16.msra.mxu0 %v1264
          %1347 = vmatprep.subr.bf16.mxu0 0
          %1348 = vmatpush1.bf16.msra.mxu0 %v1263
          %1349 = vmatprep.subr.bf16.mxu0 0
          %1350 = vmatpush1.bf16.msra.mxu0 %v1262
          %1351 = vmatprep.subr.bf16.mxu0 0
          %1352 = vmatpush1.bf16.msra.mxu0 %v1261
          %1353 = vmatprep.subr.bf16.mxu0 0
          %1354 = vmatpush1.bf16.msra.mxu0 %v1260
          %1355 = vmatprep.subr.bf16.mxu0 0
          %1356 = vmatpush1.bf16.msra.mxu0 %v1259
          %1357 = vmatprep.subr.bf16.mxu0 0
          %1358 = vmatpush1.bf16.msra.mxu0 %v1258
          %1359 = vmatprep.subr.bf16.mxu0 0
          %1360 = vmatpush1.bf16.msra.mxu0 %v1257
          %1361 = vmatprep.subr.bf16.mxu0 0
          %1362 = vmatpush2.bf16.msra.mxu0 %v1272
          %1363 = vmatprep.subr.bf16.mxu0 0
          %1364 = vmatpush2.bf16.msra.mxu0 %v1271
          %1365 = vmatprep.subr.bf16.mxu0 0
          %1366 = vmatpush2.bf16.msra.mxu0 %v1270
          %1367 = vmatprep.subr.bf16.mxu0 0
          %1368 = vmatpush2.bf16.msra.mxu0 %v1269
          %1369 = vmatprep.subr.bf16.mxu0 0
          %1370 = vmatpush2.bf16.msra.mxu0 %v1268
          %1371 = vmatprep.subr.bf16.mxu0 0
          %1372 = vmatpush2.bf16.msra.mxu0 %v1267
          %1373 = vmatprep.subr.bf16.mxu0 0
          %1374 = vmatpush2.bf16.msra.mxu0 %v1266
          %1375 = vmatprep.subr.bf16.mxu0 0
          %1376 = vmatpush2.bf16.msra.mxu0 %v1265
          %1377 = vmatprep.mubr.bf16.mxu0 %v1108
          %1378 = vmatmul.mubr.bf16.gmra.mxu0 %v1107
          %v1379 = vpop.f32.mrf.mxu0
          %v1380 = vadd.f32 %v1340, %v1379
          %v1381 = vpop.f32.mrf.mxu0
          %v1382 = vpop.f32.mrf.mxu0
          %v1383 = vpop.f32.mrf.mxu0
          %1384 = vdwg.mxu0
          %1385 = vst [vmem:[%s393] sm:$0x3] %v1380
        $region94: #{sdl_forward.2} parent=69 // pred_fallthru
          _
        %p1386 = scmp.lt.s32.totalorder %s27, 7
        %s1387 = scalar_select %p1386, %s27, 7
        %p1388 = scmp.lt.s32.totalorder %s26, 0
        %s1389 = scalar_select %p1388, %s26, 0
        %s1390 = sadd.s32 %s1389, %s1387
        %s1391 = smul.addr %s1390, 2
        %s1392 = scalar_lea.vmem %s4, %s1391
        // Predicated region
        $region95: #{sdl_forward.2} parent=69 // pred_check
          %p1393 = pneg %p168
        $region96: #{sdl_forward.2} parent=69 // pred_check_branch
          %1395 = sbr.rel (%p1393) target = $region98
        $region97: #{sdl_forward.2} parent=69 // pred_region
          _
        $region98: #{sdl_forward.2} parent=69 // pred_fallthru
          _
      $region70: #{sdl_forward.2} parent=5 // pred_fallthru
        _
      %p1396 = scmp.le.s32.totalorder 2, %s16
      // Predicated region
      $region99: #{sdl_forward.2} parent=5 // pred_check
        %p1397 = pneg %p1396
      $region100: #{sdl_forward.2} parent=5 // pred_check_branch
        %1399 = sbr.rel (%p1397) target = $region102
      $region101: #{sdl_forward.2} parent=5 // pred_region
        %s1400 = ssub.s32 %s16, 2
        // Predicated region
        $region103: #{sdl_forward.2} parent=101 // pred_check
          %p1401 = pneg %p174
        $region104: #{sdl_forward.2} parent=101 // pred_check_branch
          %1403 = sbr.rel (%p1401) target = $region106
        $region105: #{sdl_forward.2} parent=101 // pred_region
          %p1404 = scmp.lt.s32.totalorder %s30, 7
          %s1405 = scalar_select %p1404, %s30, 7
          %p1406 = scmp.lt.s32.totalorder %s29, 0
          %s1407 = scalar_select %p1406, %s29, 0
          %s1408 = sadd.s32 %s1407, %s1405
          %s1409 = smul.addr %s1408, 2
          %s1410 = scalar_lea.vmem %s4, %s1409
        $region106: #{sdl_forward.2} parent=101 // pred_fallthru
          _
      $region102: #{sdl_forward.2} parent=5 // pred_fallthru
        _
    $region6: #{sdl_forward.2} parent=1 // loop_footer
      %s20 = sadd.s32 1, %s16
    $region7: #{sdl_forward.2} parent=1 // loop_footer_branch
      %15 = sbr.rel target = $region3
    $region8: #{sdl_forward.2} parent=1 // loop_exit
      _
    %1411 = vsyncpa [#allocation5], 1
    %s1412 = scalar_lea.sflag [#allocation5], 1
    %1413 = vsyncpa %s1412, 1
    %1414 = vsyncpa [#allocation7], 1
    %s1415 = scalar_lea.sflag [#allocation7], 1
    %1416 = vsyncpa %s1415, 1

</llo_original>
